<compile_context>
chip_gen: v6e
topology: v6e:2x2x1
jax: 0.10.0
libtpu: 0.0.40
codegen_flags: <defaults>
</compile_context>

<pallas_src>
import math

import jax
import jax.numpy as jnp
from jax import lax
from jax.experimental import pallas as pl
from jax.experimental.pallas import tpu as pltpu

LN_EPS = 1e-5  # PyTorch nn.LayerNorm default
TWO_PI = 2.0 * math.pi


def _layernorm(h, gamma, beta):
    # f32 statistics; rsqrt goes to the EUP slot.
    mu = jnp.mean(h, axis=-1, keepdims=True)
    var = jnp.mean((h - mu) ** 2, axis=-1, keepdims=True)
    return (h - mu) * lax.rsqrt(var + LN_EPS) * gamma + beta


def fourier_embedding_kernel(
    x_ref,      # [TB, D]    f32
    sf2_ref,    # [D, 2F]    f32   (freqs*2pi tiled twice along lanes)
    ph_ref,     # [1, 2F]    f32   ([0]*F ++ [-pi/2]*F ; cos(a-pi/2) = sin(a))
    w1cs_ref,   # [D, 2F, H] matmul dtype (cos|sin rows of w1)
    w1x_ref,    # [D, H]     f32   (row of w1 multiplying the raw x feature)
    b1_ref,     # [D, H]     f32
    g1_ref,     # [D, H]     f32   per-dim LayerNorm gamma
    bt1_ref,    # [D, H]     f32   per-dim LayerNorm beta
    w2_ref,     # [D*H, H]   matmul dtype (d-major stacked)
    b2_ref,     # [1, H]     f32   (sum over d of b2[d])
    g3_ref,     # [1, H]     f32   to_out LayerNorm gamma
    bt3_ref,    # [1, H]     f32   to_out LayerNorm beta
    w3_ref,     # [H, H]     matmul dtype
    b3_ref,     # [1, H]     f32
    out_ref,    # [TB, H]    f32
):
    D = sf2_ref.shape[0]
    mm_dtype = w1cs_ref.dtype  # bf16 on v6e/v7x path, f32 otherwise

    x = x_ref[...].astype(jnp.float32)  # [TB, D]
    phase = ph_ref[...]                 # [1, 2F]

    h_parts = []
    for d in range(D):  # static unroll; D is small and static
        xd = x[:, d:d + 1]                               # [TB, 1]
        # cos and sin features in one EUP pass: sin(a) == cos(a - pi/2).
        ang = xd * sf2_ref[d:d + 1, :] + phase           # [TB, 2F]
        feat = jnp.cos(ang)                              # [TB, 2F]
        # First Linear without concatenation: one dot + rank-1 x term + bias,
        # all f32-accumulated.
        h = (
            jnp.dot(feat.astype(mm_dtype), w1cs_ref[d],
                    preferred_element_type=jnp.float32)
            + xd * w1x_ref[d:d + 1, :]
            + b1_ref[d:d + 1, :]
        )
        h = _layernorm(h, g1_ref[d:d + 1, :], bt1_ref[d:d + 1, :])
        h = jnp.maximum(h, 0.0)
        h_parts.append(h)

    # Fused second Linear + sum over dims: [TB, D*H] @ [D*H, H] (K = D*H).
    h_all = jnp.concatenate(h_parts, axis=-1)            # [TB, D*H]
    acc = jnp.dot(h_all.astype(mm_dtype), w2_ref[...],
                  preferred_element_type=jnp.float32) + b2_ref[...]

    # to_out: LayerNorm -> ReLU -> Linear
    y = _layernorm(acc, g3_ref[...], bt3_ref[...])
    y = jnp.maximum(y, 0.0)
    y = jnp.dot(y.astype(mm_dtype), w3_ref[...],
                preferred_element_type=jnp.float32) + b3_ref[...]
    out_ref[...] = y.astype(out_ref.dtype)


def _pick_block_b(B: int, max_tb: int = 1024) -> int:
    """Largest batch tile <= max_tb that divides B (multiple of 8), else full B."""
    if B <= max_tb:
        return B
    start = max_tb - (max_tb % 8)
    for tb in range(start, 7, -8):
        if B % tb == 0:
            return tb
    return B


def fourier_embedding_pallas(x, params, *, use_bf16_matmul: bool = False,
                             max_block_b: int = 1024):
    """x: [B, input_dim] float32 -> [B, hidden_dim] float32."""
    B, D = x.shape
    F = params["freqs"].shape[1]
    H = params["w2"].shape[-1]

    mm_dtype = jnp.bfloat16 if use_bf16_matmul else jnp.float32

    # One-time weight / constant re-layout (plain JAX, outside the kernel).
    sf = params["freqs"] * TWO_PI                        # [D, F]  freqs * 2pi
    sf2 = jnp.concatenate([sf, sf], axis=1)              # [D, 2F]
    phase = jnp.concatenate(
        [jnp.zeros((1, F), jnp.float32),
         jnp.full((1, F), -0.5 * math.pi, jnp.float32)], axis=1)   # [1, 2F]

    w1 = params["w1"]                                    # [D, 2F+1, H]
    w1cs = w1[:, :2 * F, :].astype(mm_dtype)             # cos|sin rows
    w1x = w1[:, 2 * F, :]                                # raw-x row, [D, H] f32
    w2s = params["w2"].reshape(D * H, H).astype(mm_dtype)   # d-major stack
    b2sum = params["b2"].sum(axis=0).reshape(1, H)       # sum over d (K-fusion)
    w3 = params["w3"].astype(mm_dtype)
    b1 = params["b1"]
    g1 = params["ln1_g"]
    bt1 = params["ln1_b"]
    g3 = params["ln3_g"].reshape(1, H)
    bt3 = params["ln3_b"].reshape(1, H)
    b3 = params["b3"].reshape(1, H)

    TB = _pick_block_b(B, max_block_b)
    nb = B // TB

    const2 = lambda i: (0, 0)
    const3 = lambda i: (0, 0, 0)

    return pl.pallas_call(
        fourier_embedding_kernel,
        out_shape=jax.ShapeDtypeStruct((B, H), jnp.float32),
        grid_spec=pltpu.PrefetchScalarGridSpec(
            num_scalar_prefetch=0,
            grid=(nb,),
            in_specs=[
                pl.BlockSpec((TB, D), lambda i: (i, 0)),     # x tile
                pl.BlockSpec((D, 2 * F), const2),            # freqs*2pi (tiled x2)
                pl.BlockSpec((1, 2 * F), const2),            # phase offsets
                pl.BlockSpec((D, 2 * F, H), const3),         # w1 cos|sin block
                pl.BlockSpec((D, H), const2),                # w1 raw-x row
                pl.BlockSpec((D, H), const2),                # b1
                pl.BlockSpec((D, H), const2),                # ln1 gamma
                pl.BlockSpec((D, H), const2),                # ln1 beta
                pl.BlockSpec((D * H, H), const2),            # stacked w2
                pl.BlockSpec((1, H), const2),                # summed b2
                pl.BlockSpec((1, H), const2),                # to_out ln gamma
                pl.BlockSpec((1, H), const2),                # to_out ln beta
                pl.BlockSpec((H, H), const2),                # to_out w
                pl.BlockSpec((1, H), const2),                # to_out b
            ],
            out_specs=pl.BlockSpec((TB, H), lambda i: (i, 0)),
        ),
        compiler_params=pltpu.CompilerParams(
            dimension_semantics=("parallel",),
        ),
    )(x, sf2, phase, w1cs, w1x, b1, g1, bt1, w2s, b2sum, g3, bt3, w3, b3)


def fourier_embedding_ref(x, params):
    """Pure-JAX reference mirroring the PyTorch forward."""
    D = params["freqs"].shape[0]
    ang = x[..., None] * params["freqs"] * TWO_PI                  # [B, D, F]
    feats = jnp.concatenate([jnp.cos(ang), jnp.sin(ang), x[..., None]], axis=-1)
    acc = 0.0
    for i in range(D):
        h = feats[:, i, :] @ params["w1"][i] + params["b1"][i]
        h = _layernorm(h, params["ln1_g"][i], params["ln1_b"][i])
        h = jnp.maximum(h, 0.0)
        h = h @ params["w2"][i] + params["b2"][i]
        acc = acc + h
    y = _layernorm(acc, params["ln3_g"], params["ln3_b"])
    y = jnp.maximum(y, 0.0)
    return y @ params["w3"] + params["b3"]


def make_params(key, input_dim, hidden_dim, num_freq_bands):
    IN = 2 * num_freq_bands + 1
    ks = jax.random.split(key, 8)
    s = 0.1
    return {
        "freqs": jax.random.normal(ks[0], (input_dim, num_freq_bands), jnp.float32),
        "w1": s * jax.random.normal(ks[1], (input_dim, IN, hidden_dim), jnp.float32),
        "b1": s * jax.random.normal(ks[2], (input_dim, hidden_dim), jnp.float32),
        "ln1_g": jnp.ones((input_dim, hidden_dim), jnp.float32),
        "ln1_b": jnp.zeros((input_dim, hidden_dim), jnp.float32),
        "w2": s * jax.random.normal(ks[3], (input_dim, hidden_dim, hidden_dim), jnp.float32),
        "b2": s * jax.random.normal(ks[4], (input_dim, hidden_dim), jnp.float32),
        "ln3_g": jnp.ones((hidden_dim,), jnp.float32),
        "ln3_b": jnp.zeros((hidden_dim,), jnp.float32),
        "w3": s * jax.random.normal(ks[5], (hidden_dim, hidden_dim), jnp.float32),
        "b3": s * jax.random.normal(ks[6], (hidden_dim,), jnp.float32),
    }


if __name__ == "__main__":
    B, INPUT_DIM, HIDDEN_DIM, NUM_FREQ_BANDS = 8, 4, 32, 8

    key = jax.random.PRNGKey(0)
    k_param, k_x = jax.random.split(key)
    params = make_params(k_param, INPUT_DIM, HIDDEN_DIM, NUM_FREQ_BANDS)
    x = jax.random.normal(k_x, (B, INPUT_DIM), jnp.float32)

    ref = fourier_embedding_ref(x, params)

    # f32 matmul path (v5e-safe default).  sin is produced as cos(a - pi/2) in
    # the kernel, which differs from jnp.sin at the ~1e-6 level, so allow a
    # slightly looser (but still tight) tolerance.
    out = fourier_embedding_pallas(x, params, use_bf16_matmul=False)
    out = jax.block_until_ready(out)
    assert out.shape == (B, HIDDEN_DIM)
    assert jnp.allclose(out, ref, rtol=5e-4, atol=5e-4), \
        f"f32 path max abs err {jnp.max(jnp.abs(out - ref))}"

    # bf16 matmul-operand path (v6e / v7x MXU), f32 accumulation + f32 LayerNorm.
    out_bf16 = fourier_embedding_pallas(x, params, use_bf16_matmul=True)
    out_bf16 = jax.block_until_ready(out_bf16)
    assert jnp.allclose(out_bf16, ref, rtol=6e-2, atol=6e-2), \
        f"bf16 path max abs err {jnp.max(jnp.abs(out_bf16 - ref))}"

    print("KERNEL_OK")
</pallas_src>

<mosaic_0001>
module attributes {stable_mosaic.version = 11 : i64} {
  func.func @fourier_embedding_kernel(%arg0: i32, %arg1: memref<8x4xf32, #tpu.memory_space<vmem>>, %arg2: memref<4x16xf32, #tpu.memory_space<vmem>>, %arg3: memref<1x16xf32, #tpu.memory_space<vmem>>, %arg4: memref<4x16x32xf32, #tpu.memory_space<vmem>>, %arg5: memref<4x32xf32, #tpu.memory_space<vmem>>, %arg6: memref<4x32xf32, #tpu.memory_space<vmem>>, %arg7: memref<4x32xf32, #tpu.memory_space<vmem>>, %arg8: memref<4x32xf32, #tpu.memory_space<vmem>>, %arg9: memref<128x32xf32, #tpu.memory_space<vmem>>, %arg10: memref<1x32xf32, #tpu.memory_space<vmem>>, %arg11: memref<1x32xf32, #tpu.memory_space<vmem>>, %arg12: memref<1x32xf32, #tpu.memory_space<vmem>>, %arg13: memref<32x32xf32, #tpu.memory_space<vmem>>, %arg14: memref<1x32xf32, #tpu.memory_space<vmem>>, %arg15: memref<8x32xf32, #tpu.memory_space<vmem>>) attributes {dimension_semantics = [#tpu.dimension_semantics<parallel>], iteration_bounds = array<i64: 1>, scalar_prefetch = 0 : i64, scratch_operands = 0 : i64, tpu.core_type = #tpu.core_type<tc>, window_params = [{transform_indices = @transform_0, window_bounds = array<i64: 8, 4>}, {pipeline_mode = #tpu.pipeline_mode<synchronous>, transform_indices = @transform_1, window_bounds = array<i64: 4, 16>}, {pipeline_mode = #tpu.pipeline_mode<synchronous>, transform_indices = @transform_2, window_bounds = array<i64: 1, 16>}, {pipeline_mode = #tpu.pipeline_mode<synchronous>, transform_indices = @transform_3, window_bounds = array<i64: 4, 16, 32>}, {pipeline_mode = #tpu.pipeline_mode<synchronous>, transform_indices = @transform_4, window_bounds = array<i64: 4, 32>}, {pipeline_mode = #tpu.pipeline_mode<synchronous>, transform_indices = @transform_5, window_bounds = array<i64: 4, 32>}, {pipeline_mode = #tpu.pipeline_mode<synchronous>, transform_indices = @transform_6, window_bounds = array<i64: 4, 32>}, {pipeline_mode = #tpu.pipeline_mode<synchronous>, transform_indices = @transform_7, window_bounds = array<i64: 4, 32>}, {pipeline_mode = #tpu.pipeline_mode<synchronous>, transform_indices = @transform_8, window_bounds = array<i64: 128, 32>}, {pipeline_mode = #tpu.pipeline_mode<synchronous>, transform_indices = @transform_9, window_bounds = array<i64: 1, 32>}, {pipeline_mode = #tpu.pipeline_mode<synchronous>, transform_indices = @transform_10, window_bounds = array<i64: 1, 32>}, {pipeline_mode = #tpu.pipeline_mode<synchronous>, transform_indices = @transform_11, window_bounds = array<i64: 1, 32>}, {pipeline_mode = #tpu.pipeline_mode<synchronous>, transform_indices = @transform_12, window_bounds = array<i64: 32, 32>}, {pipeline_mode = #tpu.pipeline_mode<synchronous>, transform_indices = @transform_13, window_bounds = array<i64: 1, 32>}, {transform_indices = @transform_14, window_bounds = array<i64: 8, 32>}]} {
    %c0 = arith.constant 0 : index
    %c0_0 = arith.constant 0 : index
    %0 = vector.load %arg1[%c0, %c0_0] : memref<8x4xf32, #tpu.memory_space<vmem>>, vector<8x4xf32>
    %c0_1 = arith.constant 0 : index
    %c0_2 = arith.constant 0 : index
    %1 = vector.load %arg3[%c0_1, %c0_2] : memref<1x16xf32, #tpu.memory_space<vmem>>, vector<1x16xf32>
    %2 = vector.extract_strided_slice %0 {offsets = [0, 0], sizes = [8, 1], strides = [1, 1]} : vector<8x4xf32> to vector<8x1xf32>
    %c0_3 = arith.constant 0 : index
    %c0_4 = arith.constant 0 : index
    %3 = vector.load %arg2[%c0_3, %c0_4] : memref<4x16xf32, #tpu.memory_space<vmem>>, vector<1x16xf32>
    %4 = vector.broadcast %2 : vector<8x1xf32> to vector<8x16xf32>
    %5 = vector.broadcast %3 : vector<1x16xf32> to vector<8x16xf32>
    %6 = arith.mulf %4, %5 : vector<8x16xf32>
    %7 = vector.broadcast %1 : vector<1x16xf32> to vector<8x16xf32>
    %8 = arith.addf %6, %7 : vector<8x16xf32>
    %9 = math.cos %8 : vector<8x16xf32>
    %c0_5 = arith.constant 0 : index
    %c0_6 = arith.constant 0 : index
    %c0_7 = arith.constant 0 : index
    %10 = vector.load %arg4[%c0_5, %c0_6, %c0_7] : memref<4x16x32xf32, #tpu.memory_space<vmem>>, vector<1x16x32xf32>
    %11 = vector.shape_cast %10 : vector<1x16x32xf32> to vector<16x32xf32>
    %cst = arith.constant dense<0.000000e+00> : vector<8x32xf32>
    %12 = tpu.matmul %9, %11, %cst {dimension_numbers = #tpu.dot_dimension_numbers<[1], [0], [0], [1], [0, 0, 1, 1], [], []>} : vector<8x16xf32>, vector<16x32xf32>, vector<8x32xf32> -> vector<8x32xf32>
    %c0_8 = arith.constant 0 : index
    %c0_9 = arith.constant 0 : index
    %13 = vector.load %arg5[%c0_8, %c0_9] : memref<4x32xf32, #tpu.memory_space<vmem>>, vector<1x32xf32>
    %14 = vector.broadcast %2 : vector<8x1xf32> to vector<8x32xf32>
    %15 = vector.broadcast %13 : vector<1x32xf32> to vector<8x32xf32>
    %16 = arith.mulf %14, %15 : vector<8x32xf32>
    %17 = arith.addf %12, %16 : vector<8x32xf32>
    %c0_10 = arith.constant 0 : index
    %c0_11 = arith.constant 0 : index
    %18 = vector.load %arg6[%c0_10, %c0_11] : memref<4x32xf32, #tpu.memory_space<vmem>>, vector<1x32xf32>
    %19 = vector.broadcast %18 : vector<1x32xf32> to vector<8x32xf32>
    %20 = arith.addf %17, %19 : vector<8x32xf32>
    %c0_12 = arith.constant 0 : index
    %c0_13 = arith.constant 0 : index
    %21 = vector.load %arg7[%c0_12, %c0_13] : memref<4x32xf32, #tpu.memory_space<vmem>>, vector<1x32xf32>
    %c0_14 = arith.constant 0 : index
    %c0_15 = arith.constant 0 : index
    %22 = vector.load %arg8[%c0_14, %c0_15] : memref<4x32xf32, #tpu.memory_space<vmem>>, vector<1x32xf32>
    %cst_16 = arith.constant dense<0.000000e+00> : vector<8xf32>
    %23 = vector.multi_reduction <add>, %20, %cst_16 [1] : vector<8x32xf32> to vector<8xf32>
    %24 = vector.shape_cast %23 : vector<8xf32> to vector<8x1xf32>
    %cst_17 = arith.constant 3.200000e+01 : f32
    %25 = vector.broadcast %cst_17 : f32 to vector<8x1xf32>
    %26 = arith.divf %24, %25 : vector<8x1xf32>
    %27 = vector.broadcast %26 : vector<8x1xf32> to vector<8x32xf32>
    %28 = arith.subf %20, %27 : vector<8x32xf32>
    %29 = arith.mulf %28, %28 : vector<8x32xf32>
    %cst_18 = arith.constant dense<0.000000e+00> : vector<8xf32>
    %30 = vector.multi_reduction <add>, %29, %cst_18 [1] : vector<8x32xf32> to vector<8xf32>
    %31 = vector.shape_cast %30 : vector<8xf32> to vector<8x1xf32>
    %cst_19 = arith.constant 3.200000e+01 : f32
    %32 = vector.broadcast %cst_19 : f32 to vector<8x1xf32>
    %33 = arith.divf %31, %32 : vector<8x1xf32>
    %34 = vector.broadcast %26 : vector<8x1xf32> to vector<8x32xf32>
    %35 = arith.subf %20, %34 : vector<8x32xf32>
    %cst_20 = arith.constant 9.99999974E-6 : f32
    %36 = vector.broadcast %cst_20 : f32 to vector<8x1xf32>
    %37 = arith.addf %33, %36 : vector<8x1xf32>
    %38 = math.rsqrt %37 : vector<8x1xf32>
    %39 = vector.broadcast %38 : vector<8x1xf32> to vector<8x32xf32>
    %40 = arith.mulf %35, %39 : vector<8x32xf32>
    %41 = vector.broadcast %21 : vector<1x32xf32> to vector<8x32xf32>
    %42 = arith.mulf %40, %41 : vector<8x32xf32>
    %43 = vector.broadcast %22 : vector<1x32xf32> to vector<8x32xf32>
    %44 = arith.addf %42, %43 : vector<8x32xf32>
    %cst_21 = arith.constant 0.000000e+00 : f32
    %45 = vector.broadcast %cst_21 : f32 to vector<8x32xf32>
    %46 = arith.maximumf %44, %45 : vector<8x32xf32>
    %47 = vector.extract_strided_slice %0 {offsets = [0, 1], sizes = [8, 1], strides = [1, 1]} : vector<8x4xf32> to vector<8x1xf32>
    %c1 = arith.constant 1 : index
    %c0_22 = arith.constant 0 : index
    %48 = vector.load %arg2[%c1, %c0_22] : memref<4x16xf32, #tpu.memory_space<vmem>>, vector<1x16xf32>
    %49 = vector.broadcast %47 : vector<8x1xf32> to vector<8x16xf32>
    %50 = vector.broadcast %48 : vector<1x16xf32> to vector<8x16xf32>
    %51 = arith.mulf %49, %50 : vector<8x16xf32>
    %52 = vector.broadcast %1 : vector<1x16xf32> to vector<8x16xf32>
    %53 = arith.addf %51, %52 : vector<8x16xf32>
    %54 = math.cos %53 : vector<8x16xf32>
    %c1_23 = arith.constant 1 : index
    %c0_24 = arith.constant 0 : index
    %c0_25 = arith.constant 0 : index
    %55 = vector.load %arg4[%c1_23, %c0_24, %c0_25] : memref<4x16x32xf32, #tpu.memory_space<vmem>>, vector<1x16x32xf32>
    %56 = vector.shape_cast %55 : vector<1x16x32xf32> to vector<16x32xf32>
    %cst_26 = arith.constant dense<0.000000e+00> : vector<8x32xf32>
    %57 = tpu.matmul %54, %56, %cst_26 {dimension_numbers = #tpu.dot_dimension_numbers<[1], [0], [0], [1], [0, 0, 1, 1], [], []>} : vector<8x16xf32>, vector<16x32xf32>, vector<8x32xf32> -> vector<8x32xf32>
    %c1_27 = arith.constant 1 : index
    %c0_28 = arith.constant 0 : index
    %58 = vector.load %arg5[%c1_27, %c0_28] : memref<4x32xf32, #tpu.memory_space<vmem>>, vector<1x32xf32>
    %59 = vector.broadcast %47 : vector<8x1xf32> to vector<8x32xf32>
    %60 = vector.broadcast %58 : vector<1x32xf32> to vector<8x32xf32>
    %61 = arith.mulf %59, %60 : vector<8x32xf32>
    %62 = arith.addf %57, %61 : vector<8x32xf32>
    %c1_29 = arith.constant 1 : index
    %c0_30 = arith.constant 0 : index
    %63 = vector.load %arg6[%c1_29, %c0_30] : memref<4x32xf32, #tpu.memory_space<vmem>>, vector<1x32xf32>
    %64 = vector.broadcast %63 : vector<1x32xf32> to vector<8x32xf32>
    %65 = arith.addf %62, %64 : vector<8x32xf32>
    %c1_31 = arith.constant 1 : index
    %c0_32 = arith.constant 0 : index
    %66 = vector.load %arg7[%c1_31, %c0_32] : memref<4x32xf32, #tpu.memory_space<vmem>>, vector<1x32xf32>
    %c1_33 = arith.constant 1 : index
    %c0_34 = arith.constant 0 : index
    %67 = vector.load %arg8[%c1_33, %c0_34] : memref<4x32xf32, #tpu.memory_space<vmem>>, vector<1x32xf32>
    %cst_35 = arith.constant dense<0.000000e+00> : vector<8xf32>
    %68 = vector.multi_reduction <add>, %65, %cst_35 [1] : vector<8x32xf32> to vector<8xf32>
    %69 = vector.shape_cast %68 : vector<8xf32> to vector<8x1xf32>
    %cst_36 = arith.constant 3.200000e+01 : f32
    %70 = vector.broadcast %cst_36 : f32 to vector<8x1xf32>
    %71 = arith.divf %69, %70 : vector<8x1xf32>
    %72 = vector.broadcast %71 : vector<8x1xf32> to vector<8x32xf32>
    %73 = arith.subf %65, %72 : vector<8x32xf32>
    %74 = arith.mulf %73, %73 : vector<8x32xf32>
    %cst_37 = arith.constant dense<0.000000e+00> : vector<8xf32>
    %75 = vector.multi_reduction <add>, %74, %cst_37 [1] : vector<8x32xf32> to vector<8xf32>
    %76 = vector.shape_cast %75 : vector<8xf32> to vector<8x1xf32>
    %cst_38 = arith.constant 3.200000e+01 : f32
    %77 = vector.broadcast %cst_38 : f32 to vector<8x1xf32>
    %78 = arith.divf %76, %77 : vector<8x1xf32>
    %79 = vector.broadcast %71 : vector<8x1xf32> to vector<8x32xf32>
    %80 = arith.subf %65, %79 : vector<8x32xf32>
    %cst_39 = arith.constant 9.99999974E-6 : f32
    %81 = vector.broadcast %cst_39 : f32 to vector<8x1xf32>
    %82 = arith.addf %78, %81 : vector<8x1xf32>
    %83 = math.rsqrt %82 : vector<8x1xf32>
    %84 = vector.broadcast %83 : vector<8x1xf32> to vector<8x32xf32>
    %85 = arith.mulf %80, %84 : vector<8x32xf32>
    %86 = vector.broadcast %66 : vector<1x32xf32> to vector<8x32xf32>
    %87 = arith.mulf %85, %86 : vector<8x32xf32>
    %88 = vector.broadcast %67 : vector<1x32xf32> to vector<8x32xf32>
    %89 = arith.addf %87, %88 : vector<8x32xf32>
    %cst_40 = arith.constant 0.000000e+00 : f32
    %90 = vector.broadcast %cst_40 : f32 to vector<8x32xf32>
    %91 = arith.maximumf %89, %90 : vector<8x32xf32>
    %92 = vector.extract_strided_slice %0 {offsets = [0, 2], sizes = [8, 1], strides = [1, 1]} : vector<8x4xf32> to vector<8x1xf32>
    %c2 = arith.constant 2 : index
    %c0_41 = arith.constant 0 : index
    %93 = vector.load %arg2[%c2, %c0_41] : memref<4x16xf32, #tpu.memory_space<vmem>>, vector<1x16xf32>
    %94 = vector.broadcast %92 : vector<8x1xf32> to vector<8x16xf32>
    %95 = vector.broadcast %93 : vector<1x16xf32> to vector<8x16xf32>
    %96 = arith.mulf %94, %95 : vector<8x16xf32>
    %97 = vector.broadcast %1 : vector<1x16xf32> to vector<8x16xf32>
    %98 = arith.addf %96, %97 : vector<8x16xf32>
    %99 = math.cos %98 : vector<8x16xf32>
    %c2_42 = arith.constant 2 : index
    %c0_43 = arith.constant 0 : index
    %c0_44 = arith.constant 0 : index
    %100 = vector.load %arg4[%c2_42, %c0_43, %c0_44] : memref<4x16x32xf32, #tpu.memory_space<vmem>>, vector<1x16x32xf32>
    %101 = vector.shape_cast %100 : vector<1x16x32xf32> to vector<16x32xf32>
    %cst_45 = arith.constant dense<0.000000e+00> : vector<8x32xf32>
    %102 = tpu.matmul %99, %101, %cst_45 {dimension_numbers = #tpu.dot_dimension_numbers<[1], [0], [0], [1], [0, 0, 1, 1], [], []>} : vector<8x16xf32>, vector<16x32xf32>, vector<8x32xf32> -> vector<8x32xf32>
    %c2_46 = arith.constant 2 : index
    %c0_47 = arith.constant 0 : index
    %103 = vector.load %arg5[%c2_46, %c0_47] : memref<4x32xf32, #tpu.memory_space<vmem>>, vector<1x32xf32>
    %104 = vector.broadcast %92 : vector<8x1xf32> to vector<8x32xf32>
    %105 = vector.broadcast %103 : vector<1x32xf32> to vector<8x32xf32>
    %106 = arith.mulf %104, %105 : vector<8x32xf32>
    %107 = arith.addf %102, %106 : vector<8x32xf32>
    %c2_48 = arith.constant 2 : index
    %c0_49 = arith.constant 0 : index
    %108 = vector.load %arg6[%c2_48, %c0_49] : memref<4x32xf32, #tpu.memory_space<vmem>>, vector<1x32xf32>
    %109 = vector.broadcast %108 : vector<1x32xf32> to vector<8x32xf32>
    %110 = arith.addf %107, %109 : vector<8x32xf32>
    %c2_50 = arith.constant 2 : index
    %c0_51 = arith.constant 0 : index
    %111 = vector.load %arg7[%c2_50, %c0_51] : memref<4x32xf32, #tpu.memory_space<vmem>>, vector<1x32xf32>
    %c2_52 = arith.constant 2 : index
    %c0_53 = arith.constant 0 : index
    %112 = vector.load %arg8[%c2_52, %c0_53] : memref<4x32xf32, #tpu.memory_space<vmem>>, vector<1x32xf32>
    %cst_54 = arith.constant dense<0.000000e+00> : vector<8xf32>
    %113 = vector.multi_reduction <add>, %110, %cst_54 [1] : vector<8x32xf32> to vector<8xf32>
    %114 = vector.shape_cast %113 : vector<8xf32> to vector<8x1xf32>
    %cst_55 = arith.constant 3.200000e+01 : f32
    %115 = vector.broadcast %cst_55 : f32 to vector<8x1xf32>
    %116 = arith.divf %114, %115 : vector<8x1xf32>
    %117 = vector.broadcast %116 : vector<8x1xf32> to vector<8x32xf32>
    %118 = arith.subf %110, %117 : vector<8x32xf32>
    %119 = arith.mulf %118, %118 : vector<8x32xf32>
    %cst_56 = arith.constant dense<0.000000e+00> : vector<8xf32>
    %120 = vector.multi_reduction <add>, %119, %cst_56 [1] : vector<8x32xf32> to vector<8xf32>
    %121 = vector.shape_cast %120 : vector<8xf32> to vector<8x1xf32>
    %cst_57 = arith.constant 3.200000e+01 : f32
    %122 = vector.broadcast %cst_57 : f32 to vector<8x1xf32>
    %123 = arith.divf %121, %122 : vector<8x1xf32>
    %124 = vector.broadcast %116 : vector<8x1xf32> to vector<8x32xf32>
    %125 = arith.subf %110, %124 : vector<8x32xf32>
    %cst_58 = arith.constant 9.99999974E-6 : f32
    %126 = vector.broadcast %cst_58 : f32 to vector<8x1xf32>
    %127 = arith.addf %123, %126 : vector<8x1xf32>
    %128 = math.rsqrt %127 : vector<8x1xf32>
    %129 = vector.broadcast %128 : vector<8x1xf32> to vector<8x32xf32>
    %130 = arith.mulf %125, %129 : vector<8x32xf32>
    %131 = vector.broadcast %111 : vector<1x32xf32> to vector<8x32xf32>
    %132 = arith.mulf %130, %131 : vector<8x32xf32>
    %133 = vector.broadcast %112 : vector<1x32xf32> to vector<8x32xf32>
    %134 = arith.addf %132, %133 : vector<8x32xf32>
    %cst_59 = arith.constant 0.000000e+00 : f32
    %135 = vector.broadcast %cst_59 : f32 to vector<8x32xf32>
    %136 = arith.maximumf %134, %135 : vector<8x32xf32>
    %137 = vector.extract_strided_slice %0 {offsets = [0, 3], sizes = [8, 1], strides = [1, 1]} : vector<8x4xf32> to vector<8x1xf32>
    %c3 = arith.constant 3 : index
    %c0_60 = arith.constant 0 : index
    %138 = vector.load %arg2[%c3, %c0_60] : memref<4x16xf32, #tpu.memory_space<vmem>>, vector<1x16xf32>
    %139 = vector.broadcast %137 : vector<8x1xf32> to vector<8x16xf32>
    %140 = vector.broadcast %138 : vector<1x16xf32> to vector<8x16xf32>
    %141 = arith.mulf %139, %140 : vector<8x16xf32>
    %142 = vector.broadcast %1 : vector<1x16xf32> to vector<8x16xf32>
    %143 = arith.addf %141, %142 : vector<8x16xf32>
    %144 = math.cos %143 : vector<8x16xf32>
    %c3_61 = arith.constant 3 : index
    %c0_62 = arith.constant 0 : index
    %c0_63 = arith.constant 0 : index
    %145 = vector.load %arg4[%c3_61, %c0_62, %c0_63] : memref<4x16x32xf32, #tpu.memory_space<vmem>>, vector<1x16x32xf32>
    %146 = vector.shape_cast %145 : vector<1x16x32xf32> to vector<16x32xf32>
    %cst_64 = arith.constant dense<0.000000e+00> : vector<8x32xf32>
    %147 = tpu.matmul %144, %146, %cst_64 {dimension_numbers = #tpu.dot_dimension_numbers<[1], [0], [0], [1], [0, 0, 1, 1], [], []>} : vector<8x16xf32>, vector<16x32xf32>, vector<8x32xf32> -> vector<8x32xf32>
    %c3_65 = arith.constant 3 : index
    %c0_66 = arith.constant 0 : index
    %148 = vector.load %arg5[%c3_65, %c0_66] : memref<4x32xf32, #tpu.memory_space<vmem>>, vector<1x32xf32>
    %149 = vector.broadcast %137 : vector<8x1xf32> to vector<8x32xf32>
    %150 = vector.broadcast %148 : vector<1x32xf32> to vector<8x32xf32>
    %151 = arith.mulf %149, %150 : vector<8x32xf32>
    %152 = arith.addf %147, %151 : vector<8x32xf32>
    %c3_67 = arith.constant 3 : index
    %c0_68 = arith.constant 0 : index
    %153 = vector.load %arg6[%c3_67, %c0_68] : memref<4x32xf32, #tpu.memory_space<vmem>>, vector<1x32xf32>
    %154 = vector.broadcast %153 : vector<1x32xf32> to vector<8x32xf32>
    %155 = arith.addf %152, %154 : vector<8x32xf32>
    %c3_69 = arith.constant 3 : index
    %c0_70 = arith.constant 0 : index
    %156 = vector.load %arg7[%c3_69, %c0_70] : memref<4x32xf32, #tpu.memory_space<vmem>>, vector<1x32xf32>
    %c3_71 = arith.constant 3 : index
    %c0_72 = arith.constant 0 : index
    %157 = vector.load %arg8[%c3_71, %c0_72] : memref<4x32xf32, #tpu.memory_space<vmem>>, vector<1x32xf32>
    %cst_73 = arith.constant dense<0.000000e+00> : vector<8xf32>
    %158 = vector.multi_reduction <add>, %155, %cst_73 [1] : vector<8x32xf32> to vector<8xf32>
    %159 = vector.shape_cast %158 : vector<8xf32> to vector<8x1xf32>
    %cst_74 = arith.constant 3.200000e+01 : f32
    %160 = vector.broadcast %cst_74 : f32 to vector<8x1xf32>
    %161 = arith.divf %159, %160 : vector<8x1xf32>
    %162 = vector.broadcast %161 : vector<8x1xf32> to vector<8x32xf32>
    %163 = arith.subf %155, %162 : vector<8x32xf32>
    %164 = arith.mulf %163, %163 : vector<8x32xf32>
    %cst_75 = arith.constant dense<0.000000e+00> : vector<8xf32>
    %165 = vector.multi_reduction <add>, %164, %cst_75 [1] : vector<8x32xf32> to vector<8xf32>
    %166 = vector.shape_cast %165 : vector<8xf32> to vector<8x1xf32>
    %cst_76 = arith.constant 3.200000e+01 : f32
    %167 = vector.broadcast %cst_76 : f32 to vector<8x1xf32>
    %168 = arith.divf %166, %167 : vector<8x1xf32>
    %169 = vector.broadcast %161 : vector<8x1xf32> to vector<8x32xf32>
    %170 = arith.subf %155, %169 : vector<8x32xf32>
    %cst_77 = arith.constant 9.99999974E-6 : f32
    %171 = vector.broadcast %cst_77 : f32 to vector<8x1xf32>
    %172 = arith.addf %168, %171 : vector<8x1xf32>
    %173 = math.rsqrt %172 : vector<8x1xf32>
    %174 = vector.broadcast %173 : vector<8x1xf32> to vector<8x32xf32>
    %175 = arith.mulf %170, %174 : vector<8x32xf32>
    %176 = vector.broadcast %156 : vector<1x32xf32> to vector<8x32xf32>
    %177 = arith.mulf %175, %176 : vector<8x32xf32>
    %178 = vector.broadcast %157 : vector<1x32xf32> to vector<8x32xf32>
    %179 = arith.addf %177, %178 : vector<8x32xf32>
    %cst_78 = arith.constant 0.000000e+00 : f32
    %180 = vector.broadcast %cst_78 : f32 to vector<8x32xf32>
    %181 = arith.maximumf %179, %180 : vector<8x32xf32>
    %182 = tpu.concatenate %46, %91, %136, %181 in 1 : vector<8x32xf32>, vector<8x32xf32>, vector<8x32xf32>, vector<8x32xf32> -> vector<8x128xf32>
    %c0_79 = arith.constant 0 : index
    %c0_80 = arith.constant 0 : index
    %183 = vector.load %arg9[%c0_79, %c0_80] : memref<128x32xf32, #tpu.memory_space<vmem>>, vector<128x32xf32>
    %cst_81 = arith.constant dense<0.000000e+00> : vector<8x32xf32>
    %184 = tpu.matmul %182, %183, %cst_81 {dimension_numbers = #tpu.dot_dimension_numbers<[1], [0], [0], [1], [0, 0, 1, 1], [], []>} : vector<8x128xf32>, vector<128x32xf32>, vector<8x32xf32> -> vector<8x32xf32>
    %c0_82 = arith.constant 0 : index
    %c0_83 = arith.constant 0 : index
    %185 = vector.load %arg10[%c0_82, %c0_83] : memref<1x32xf32, #tpu.memory_space<vmem>>, vector<1x32xf32>
    %186 = vector.broadcast %185 : vector<1x32xf32> to vector<8x32xf32>
    %187 = arith.addf %184, %186 : vector<8x32xf32>
    %c0_84 = arith.constant 0 : index
    %c0_85 = arith.constant 0 : index
    %188 = vector.load %arg11[%c0_84, %c0_85] : memref<1x32xf32, #tpu.memory_space<vmem>>, vector<1x32xf32>
    %c0_86 = arith.constant 0 : index
    %c0_87 = arith.constant 0 : index
    %189 = vector.load %arg12[%c0_86, %c0_87] : memref<1x32xf32, #tpu.memory_space<vmem>>, vector<1x32xf32>
    %cst_88 = arith.constant dense<0.000000e+00> : vector<8xf32>
    %190 = vector.multi_reduction <add>, %187, %cst_88 [1] : vector<8x32xf32> to vector<8xf32>
    %191 = vector.shape_cast %190 : vector<8xf32> to vector<8x1xf32>
    %cst_89 = arith.constant 3.200000e+01 : f32
    %192 = vector.broadcast %cst_89 : f32 to vector<8x1xf32>
    %193 = arith.divf %191, %192 : vector<8x1xf32>
    %194 = vector.broadcast %193 : vector<8x1xf32> to vector<8x32xf32>
    %195 = arith.subf %187, %194 : vector<8x32xf32>
    %196 = arith.mulf %195, %195 : vector<8x32xf32>
    %cst_90 = arith.constant dense<0.000000e+00> : vector<8xf32>
    %197 = vector.multi_reduction <add>, %196, %cst_90 [1] : vector<8x32xf32> to vector<8xf32>
    %198 = vector.shape_cast %197 : vector<8xf32> to vector<8x1xf32>
    %cst_91 = arith.constant 3.200000e+01 : f32
    %199 = vector.broadcast %cst_91 : f32 to vector<8x1xf32>
    %200 = arith.divf %198, %199 : vector<8x1xf32>
    %201 = vector.broadcast %193 : vector<8x1xf32> to vector<8x32xf32>
    %202 = arith.subf %187, %201 : vector<8x32xf32>
    %cst_92 = arith.constant 9.99999974E-6 : f32
    %203 = vector.broadcast %cst_92 : f32 to vector<8x1xf32>
    %204 = arith.addf %200, %203 : vector<8x1xf32>
    %205 = math.rsqrt %204 : vector<8x1xf32>
    %206 = vector.broadcast %205 : vector<8x1xf32> to vector<8x32xf32>
    %207 = arith.mulf %202, %206 : vector<8x32xf32>
    %208 = vector.broadcast %188 : vector<1x32xf32> to vector<8x32xf32>
    %209 = arith.mulf %207, %208 : vector<8x32xf32>
    %210 = vector.broadcast %189 : vector<1x32xf32> to vector<8x32xf32>
    %211 = arith.addf %209, %210 : vector<8x32xf32>
    %cst_93 = arith.constant 0.000000e+00 : f32
    %212 = vector.broadcast %cst_93 : f32 to vector<8x32xf32>
    %213 = arith.maximumf %211, %212 : vector<8x32xf32>
    %c0_94 = arith.constant 0 : index
    %c0_95 = arith.constant 0 : index
    %214 = vector.load %arg13[%c0_94, %c0_95] : memref<32x32xf32, #tpu.memory_space<vmem>>, vector<32x32xf32>
    %cst_96 = arith.constant dense<0.000000e+00> : vector<8x32xf32>
    %215 = tpu.matmul %213, %214, %cst_96 {dimension_numbers = #tpu.dot_dimension_numbers<[1], [0], [0], [1], [0, 0, 1, 1], [], []>} : vector<8x32xf32>, vector<32x32xf32>, vector<8x32xf32> -> vector<8x32xf32>
    %c0_97 = arith.constant 0 : index
    %c0_98 = arith.constant 0 : index
    %216 = vector.load %arg14[%c0_97, %c0_98] : memref<1x32xf32, #tpu.memory_space<vmem>>, vector<1x32xf32>
    %217 = vector.broadcast %216 : vector<1x32xf32> to vector<8x32xf32>
    %218 = arith.addf %215, %217 : vector<8x32xf32>
    %c0_99 = arith.constant 0 : index
    %c0_100 = arith.constant 0 : index
    %219 = vector.load %arg15[%c0_99, %c0_100] : memref<8x32xf32, #tpu.memory_space<vmem>>, vector<8x32xf32>
    tpu.vector_store %arg15[%c0_99, %c0_100], %218 {strides = array<i32>} : memref<8x32xf32, #tpu.memory_space<vmem>>, vector<8x32xf32>,
    return
  }
  func.func @transform_0(%arg0: i32) -> (i32, i32) {
    %c0_i32 = arith.constant 0 : i32
    %c0_i32_0 = arith.constant 0 : i32
    return %arg0, %c0_i32 : i32, i32
  }
  func.func @transform_1(%arg0: i32) -> (i32, i32) {
    %c0_i32 = arith.constant 0 : i32
    %c0_i32_0 = arith.constant 0 : i32
    %c0_i32_1 = arith.constant 0 : i32
    return %c0_i32, %c0_i32_0 : i32, i32
  }
  func.func @transform_2(%arg0: i32) -> (i32, i32) {
    %c0_i32 = arith.constant 0 : i32
    %c0_i32_0 = arith.constant 0 : i32
    %c0_i32_1 = arith.constant 0 : i32
    return %c0_i32, %c0_i32_0 : i32, i32
  }
  func.func @transform_3(%arg0: i32) -> (i32, i32, i32) {
    %c0_i32 = arith.constant 0 : i32
    %c0_i32_0 = arith.constant 0 : i32
    %c0_i32_1 = arith.constant 0 : i32
    %c0_i32_2 = arith.constant 0 : i32
    return %c0_i32, %c0_i32_0, %c0_i32_1 : i32, i32, i32
  }
  func.func @transform_4(%arg0: i32) -> (i32, i32) {
    %c0_i32 = arith.constant 0 : i32
    %c0_i32_0 = arith.constant 0 : i32
    %c0_i32_1 = arith.constant 0 : i32
    return %c0_i32, %c0_i32_0 : i32, i32
  }
  func.func @transform_5(%arg0: i32) -> (i32, i32) {
    %c0_i32 = arith.constant 0 : i32
    %c0_i32_0 = arith.constant 0 : i32
    %c0_i32_1 = arith.constant 0 : i32
    return %c0_i32, %c0_i32_0 : i32, i32
  }
  func.func @transform_6(%arg0: i32) -> (i32, i32) {
    %c0_i32 = arith.constant 0 : i32
    %c0_i32_0 = arith.constant 0 : i32
    %c0_i32_1 = arith.constant 0 : i32
    return %c0_i32, %c0_i32_0 : i32, i32
  }
  func.func @transform_7(%arg0: i32) -> (i32, i32) {
    %c0_i32 = arith.constant 0 : i32
    %c0_i32_0 = arith.constant 0 : i32
    %c0_i32_1 = arith.constant 0 : i32
    return %c0_i32, %c0_i32_0 : i32, i32
  }
  func.func @transform_8(%arg0: i32) -> (i32, i32) {
    %c0_i32 = arith.constant 0 : i32
    %c0_i32_0 = arith.constant 0 : i32
    %c0_i32_1 = arith.constant 0 : i32
    return %c0_i32, %c0_i32_0 : i32, i32
  }
  func.func @transform_9(%arg0: i32) -> (i32, i32) {
    %c0_i32 = arith.constant 0 : i32
    %c0_i32_0 = arith.constant 0 : i32
    %c0_i32_1 = arith.constant 0 : i32
    return %c0_i32, %c0_i32_0 : i32, i32
  }
  func.func @transform_10(%arg0: i32) -> (i32, i32) {
    %c0_i32 = arith.constant 0 : i32
    %c0_i32_0 = arith.constant 0 : i32
    %c0_i32_1 = arith.constant 0 : i32
    return %c0_i32, %c0_i32_0 : i32, i32
  }
  func.func @transform_11(%arg0: i32) -> (i32, i32) {
    %c0_i32 = arith.constant 0 : i32
    %c0_i32_0 = arith.constant 0 : i32
    %c0_i32_1 = arith.constant 0 : i32
    return %c0_i32, %c0_i32_0 : i32, i32
  }
  func.func @transform_12(%arg0: i32) -> (i32, i32) {
    %c0_i32 = arith.constant 0 : i32
    %c0_i32_0 = arith.constant 0 : i32
    %c0_i32_1 = arith.constant 0 : i32
    return %c0_i32, %c0_i32_0 : i32, i32
  }
  func.func @transform_13(%arg0: i32) -> (i32, i32) {
    %c0_i32 = arith.constant 0 : i32
    %c0_i32_0 = arith.constant 0 : i32
    %c0_i32_1 = arith.constant 0 : i32
    return %c0_i32, %c0_i32_0 : i32, i32
  }
  func.func @transform_14(%arg0: i32) -> (i32, i32) {
    %c0_i32 = arith.constant 0 : i32
    %c0_i32_0 = arith.constant 0 : i32
    return %arg0, %c0_i32 : i32, i32
  }
}

</mosaic_0001>

<llo_original>
// kernel: tpu_custom_call.1
$region0: #{tpu_custom_call.1}
  #allocation0 [shape = 'u32[]', space=smem, size = 0x4, offset = 0x4, fixed_abs, tag = 'smem constant byte address 0x4 - core index']
  #allocation1 [shape = 'u32[144,128]{1,0:T(1,128)}', space=vmem, size = 0x12000, scoped, tag = 'internal scratch']
  %s0 = inlined_call_operand.vmem [shape: f32[8,4], index: 0, kind: input, shape index: {}]
  %s1 = inlined_call_operand.vmem [shape: f32[4,16], index: 1, kind: input, shape index: {}]
  %s2 = inlined_call_operand.vmem [shape: f32[1,16], index: 2, kind: input, shape index: {}]
  %s3 = inlined_call_operand.vmem [shape: f32[4,16,32], index: 3, kind: input, shape index: {}]
  %s4 = inlined_call_operand.vmem [shape: f32[4,32], index: 4, kind: input, shape index: {}]
  %s5 = inlined_call_operand.vmem [shape: f32[4,32], index: 5, kind: input, shape index: {}]
  %s6 = inlined_call_operand.vmem [shape: f32[4,32], index: 6, kind: input, shape index: {}]
  %s7 = inlined_call_operand.vmem [shape: f32[4,32], index: 7, kind: input, shape index: {}]
  %s8 = inlined_call_operand.vmem [shape: f32[128,32], index: 8, kind: input, shape index: {}]
  %s9 = inlined_call_operand.vmem [shape: f32[1,32], index: 9, kind: input, shape index: {}]
  %s10 = inlined_call_operand.vmem [shape: f32[1,32], index: 10, kind: input, shape index: {}]
  %s11 = inlined_call_operand.vmem [shape: f32[1,32], index: 11, kind: input, shape index: {}]
  %s12 = inlined_call_operand.vmem [shape: f32[32,32], index: 12, kind: input, shape index: {}]
  %s13 = inlined_call_operand.vmem [shape: f32[1,32], index: 13, kind: input, shape index: {}]
  %s14 = inlined_call_operand.hbm [shape: f32[8,32], index: 14, kind: output, shape index: {}]
  %s15 = sld [smem:[#allocation0]]
  $region66: #{tpu_custom_call.1} parent=0
    _
  %s17 = ssub.s32 1, %s15
  %s18 = scalar_select 0, %s17, %s15
  $region1: #{tpu_custom_call.1} parent=0
    #allocation2 [shape = 'u8[4096]{0}', space=vmem, size = 0x1000, scoped, tag = 'output window, operand 0, single buffered']
    #allocation3 [shape = 's32[1]{0}', space=sflag, size = 0x4, scoped, tag = 'scoped memory for tpu_custom_call.1']
    %19 = vsyncpa [#allocation3], 0
    // Predicated region
    $region2: #{tpu_custom_call.1} parent=1 // pred_check
      _
    $region3: #{tpu_custom_call.1} parent=1 // pred_check_branch
      %21 = sbr.rel (0) target = $region5
    $region4: #{tpu_custom_call.1} parent=1 // pred_region
      _
    $region5: #{tpu_custom_call.1} parent=1 // pred_fallthru
      _
    // Predicated region
    $region6: #{tpu_custom_call.1} parent=1 // pred_check
      _
    $region7: #{tpu_custom_call.1} parent=1 // pred_check_branch
      %23 = sbr.rel (0) target = $region9
    $region8: #{tpu_custom_call.1} parent=1 // pred_region
      _
    $region9: #{tpu_custom_call.1} parent=1 // pred_fallthru
      _
    // Predicated region
    $region10: #{tpu_custom_call.1} parent=1 // pred_check
      _
    $region11: #{tpu_custom_call.1} parent=1 // pred_check_branch
      %25 = sbr.rel (0) target = $region13
    $region12: #{tpu_custom_call.1} parent=1 // pred_region
      _
    $region13: #{tpu_custom_call.1} parent=1 // pred_fallthru
      _
    // Predicated region
    $region14: #{tpu_custom_call.1} parent=1 // pred_check
      _
    $region15: #{tpu_custom_call.1} parent=1 // pred_check_branch
      %27 = sbr.rel (0) target = $region17
    $region16: #{tpu_custom_call.1} parent=1 // pred_region
      _
    $region17: #{tpu_custom_call.1} parent=1 // pred_fallthru
      _
    // Predicated region
    $region18: #{tpu_custom_call.1} parent=1 // pred_check
      _
    $region19: #{tpu_custom_call.1} parent=1 // pred_check_branch
      %29 = sbr.rel (0) target = $region21
    $region20: #{tpu_custom_call.1} parent=1 // pred_region
      _
    $region21: #{tpu_custom_call.1} parent=1 // pred_fallthru
      _
    // Predicated region
    $region22: #{tpu_custom_call.1} parent=1 // pred_check
      _
    $region23: #{tpu_custom_call.1} parent=1 // pred_check_branch
      %31 = sbr.rel (0) target = $region25
    $region24: #{tpu_custom_call.1} parent=1 // pred_region
      _
    $region25: #{tpu_custom_call.1} parent=1 // pred_fallthru
      _
    // Predicated region
    $region26: #{tpu_custom_call.1} parent=1 // pred_check
      _
    $region27: #{tpu_custom_call.1} parent=1 // pred_check_branch
      %33 = sbr.rel (0) target = $region29
    $region28: #{tpu_custom_call.1} parent=1 // pred_region
      _
    $region29: #{tpu_custom_call.1} parent=1 // pred_fallthru
      _
    // Predicated region
    $region30: #{tpu_custom_call.1} parent=1 // pred_check
      _
    $region31: #{tpu_custom_call.1} parent=1 // pred_check_branch
      %35 = sbr.rel (0) target = $region33
    $region32: #{tpu_custom_call.1} parent=1 // pred_region
      _
    $region33: #{tpu_custom_call.1} parent=1 // pred_fallthru
      _
    // Predicated region
    $region34: #{tpu_custom_call.1} parent=1 // pred_check
      _
    $region35: #{tpu_custom_call.1} parent=1 // pred_check_branch
      %37 = sbr.rel (0) target = $region37
    $region36: #{tpu_custom_call.1} parent=1 // pred_region
      _
    $region37: #{tpu_custom_call.1} parent=1 // pred_fallthru
      _
    // Predicated region
    $region38: #{tpu_custom_call.1} parent=1 // pred_check
      _
    $region39: #{tpu_custom_call.1} parent=1 // pred_check_branch
      %39 = sbr.rel (0) target = $region41
    $region40: #{tpu_custom_call.1} parent=1 // pred_region
      _
    $region41: #{tpu_custom_call.1} parent=1 // pred_fallthru
      _
    // Predicated region
    $region42: #{tpu_custom_call.1} parent=1 // pred_check
      _
    $region43: #{tpu_custom_call.1} parent=1 // pred_check_branch
      %41 = sbr.rel (0) target = $region45
    $region44: #{tpu_custom_call.1} parent=1 // pred_region
      _
    $region45: #{tpu_custom_call.1} parent=1 // pred_fallthru
      _
    // Predicated region
    $region46: #{tpu_custom_call.1} parent=1 // pred_check
      _
    $region47: #{tpu_custom_call.1} parent=1 // pred_check_branch
      %43 = sbr.rel (0) target = $region49
    $region48: #{tpu_custom_call.1} parent=1 // pred_region
      _
    $region49: #{tpu_custom_call.1} parent=1 // pred_fallthru
      _
    // Predicated region
    $region50: #{tpu_custom_call.1} parent=1 // pred_check
      _
    $region51: #{tpu_custom_call.1} parent=1 // pred_check_branch
      %45 = sbr.rel (0) target = $region53
    $region52: #{tpu_custom_call.1} parent=1 // pred_region
      _
    $region53: #{tpu_custom_call.1} parent=1 // pred_fallthru
      _
    // Predicated region
    $region54: #{tpu_custom_call.1} parent=1 // pred_check
      _
    $region55: #{tpu_custom_call.1} parent=1 // pred_check_branch
      %47 = sbr.rel (0) target = $region57
    $region56: #{tpu_custom_call.1} parent=1 // pred_region
      _
    $region57: #{tpu_custom_call.1} parent=1 // pred_fallthru
      _
    %v48 = vld [vmem:[%s0] sm:$0xff]
    %v49 = vld [vmem:[%s2] sm:$0x1]
    %v50 = vld [vmem:[%s1] sm:$0x1]
    %52 = vset.pattern.permute.xlu0 0
    %53 = vperm.xlu0 %52, %v48
    %v54 = vpop.permute.xlu0 %53
    %v56 = vlaneseq
    %v57 = vshrl.u32 %v56, 7
    %v58 = vsub.s32 0, %v57
    %v59 = vrot.slane %v50, %v58
    %v60 = vmul.f32 %v54, %v59
    %v62 = vlaneseq
    %v63 = vshrl.u32 %v62, 7
    %v64 = vsub.s32 0, %v63
    %v65 = vrot.slane %v49, %v64
    %v67 = vadd.f32 %v60, %v65
    %v68 = vand.u32 2147483647, %v67
    %vm69 = vcmp.le.f32.partialorder %v68, 0.7853982
    %vm70 = vcmp.lt.s32.totalorder %v67, 0
    %v71 = vand.u32 %v67, 2139095040
    %v72 = vshrl.u32 %v71, 23
    %v73 = vsub.s32 %v72, 127
    %v74 = vand.u32 2147483647, %v67
    %v75 = vand.u32 %v74, 8388607
    %v76 = vor.u32 %v75, 8388608
    %v77 = vsub.s32 0, %v76
    %v78 = vadd.s32 %v73, 1
    %vm79 = vcmp.gt.s32.totalorder %v78, 0
    %v80 = vsel %vm79, %v78, 0
    %v81 = vshrl.u32 %v80, 5
    %v82 = vand.u32 %v80, 31
    %v83 = vsub.s32 32, %v82
    %v84 = vshrl.u32 683565275, %v83
    %v85 = vshll.u32 683565275, %v82
    %v86 = vshrl.u32 2475754826, %v83
    %v87 = vor.u32 %v85, %v86
    %v88 = vshll.u32 2475754826, %v82
    %v89 = vshrl.u32 2131351028, %v83
    %v90 = vor.u32 %v88, %v89
    %v91 = vshll.u32 2131351028, %v82
    %v92 = vshrl.u32 2102212464, %v83
    %v93 = vor.u32 %v91, %v92
    %v94 = vshll.u32 2102212464, %v82
    %v95 = vshrl.u32 920167782, %v83
    %v96 = vor.u32 %v94, %v95
    %v97 = vshll.u32 920167782, %v82
    %v98 = vshrl.u32 1326507024, %v83
    %v99 = vor.u32 %v97, %v98
    %vm100 = vcmp.lt.s32.totalorder %v81, 1
    %vm101 = vcmp.lt.s32.totalorder %v81, 2
    %vm102 = vcmp.lt.s32.totalorder %v81, 3
    %vm103 = vcmp.lt.s32.totalorder %v81, 4
    %v104 = vsel %vm100, %v84, %v87
    %v105 = vsel %vm103, %v93, 2102212464
    %v106 = vsel %vm102, %v90, %v105
    %v107 = vsel %vm101, %v104, %v106
    %v108 = vsel %vm100, %v87, %v90
    %v109 = vsel %vm103, %v96, 920167782
    %v110 = vsel %vm102, %v93, %v109
    %v111 = vsel %vm101, %v108, %v110
    %v112 = vsel %vm100, %v90, %v93
    %v113 = vsel %vm103, %v99, 1326507024
    %v114 = vsel %vm102, %v96, %v113
    %v115 = vsel %vm101, %v112, %v114
    %v116 = vshll.u32 %v76, 8
    %v117 = vmul.u32.u64.compose %v116, %v115
    %v118 = vextract.low.u32 %v117
    %v119 = vextract.high.u32 %v117
    %v120 = vmul.u32.u64.compose %v116, %v111
    %v121 = vextract.low.u32 %v120
    %v122 = vextract.high.u32 %v120
    %v123 = vmul.u32 %v116, %v107
    %v124 = vadd.s32 %v119, %v121
    %vm125 = vc.u32 %v119, %v121
    %v126 = vadd.s32 %v122, 1
    %v127 = vsel %vm125, %v126, %v122
    %v128 = vadd.s32 %v123, %v127
    %v129 = vadd.s32 %v128, 536870912
    %v130 = vshrl.u32 %v129, 30
    %v131 = vshll.u32 %v130, 30
    %v132 = vsub.s32 %v128, %v131
    %vm133 = vcmp.lt.s32.totalorder %v132, 0
    %v134 = vsub.s32 0, %v132
    %v135 = vsel %vm133, %v134, %v132
    %v136 = vclz %v135
    %v137 = vsub.s32 %v136, 2
    %vm138 = vcmp.gt.s32.totalorder 0, %v137
    %v139 = vsel %vm138, 0, %v137
    %v140 = vsub.s32 32, %v139
    %v141 = vshll.u32 %v132, %v139
    %v142 = vshrl.u32 %v124, %v140
    %v143 = vor.u32 %v141, %v142
    %v144 = vsub.s32 4294967266, %v139
    %v145 = vadd.s32 %v144, 127
    %v146 = vshll.u32 %v145, 23
    %v147 = vor.u32 4788187, %v146
    %v148 = vand.u32 2147483647, %v147
    %v150 = vcvt.s32.f32 %v143
    %v151 = vmul.f32 %v150, %v148
    %v152 = vxor.u32 %v151, 2147483648
    %v153 = vsel %vm70, %v152, %v151
    %v154 = vsub.s32 4, %v130
    %v155 = vsel %vm70, %v154, %v130
    %v156 = vsel %vm69, %v67, %v153
    %v157 = vsel %vm69, 0, %v155
    %v158 = vcosq.f32.pop %v156
    %v159 = vsinq.f32.pop %v156
    %vm160 = vweird.f32 %v67
    %v161 = vand.u32 %v157, 3
    %vm162 = vcmp.lt.s32.totalorder %v161, 2
    %vm163 = vcmp.eq.s32.totalorder %v161, 0
    %v164 = vxor.u32 %v159, 2147483648
    %v165 = vsel %vm163, %v158, %v164
    %vm166 = vcmp.eq.s32.totalorder %v161, 2
    %v167 = vxor.u32 %v158, 2147483648
    %v168 = vsel %vm166, %v167, %v159
    %v169 = vsel %vm162, %v165, %v168
    %v170 = vsel %vm160, nan, %v169
    %v171 = vld [vmem:[%s3] sm:$0xff]
    %v172 = vld [vmem:[%s3 + $0x8] sm:$0xff]
    %v173 = vld [vmem:[%s4] sm:$0x1]
    %v174 = vlaneseq
    %v175 = vshrl.u32 %v174, 7
    %v176 = vsub.s32 0, %v175
    %v177 = vrot.slane %v173, %v176
    %v178 = vmul.f32 %v54, %v177
    %vm179 = vcmask 130048
    %v181 = vsel %vm179, %v170, 0
    %183 = vmatprep.subr.mxu0 0.0
    %184 = vmatpush1.msra.mxu0 0.0
    %185 = vmatprep.subr.mxu0 0.0
    %186 = vmatpush1.msra.mxu0 0.0
    %187 = vmatprep.subr.mxu0 0.0
    %188 = vmatpush1.msra.mxu0 0.0
    %189 = vmatprep.subr.mxu0 0.0
    %190 = vmatpush1.msra.mxu0 0.0
    %191 = vmatprep.subr.mxu0 0.0
    %192 = vmatpush1.msra.mxu0 0.0
    %193 = vmatprep.subr.mxu0 0.0
    %194 = vmatpush1.msra.mxu0 0.0
    %195 = vmatprep.subr.mxu0 0.0
    %196 = vmatpush1.msra.mxu0 0.0
    %197 = vmatprep.subr.mxu0 0.0
    %198 = vmatpush1.msra.mxu0 0.0
    %199 = vmatprep.subr.mxu0 0.0
    %200 = vmatpush1.msra.mxu0 0.0
    %201 = vmatprep.subr.mxu0 0.0
    %202 = vmatpush1.msra.mxu0 0.0
    %203 = vmatprep.subr.mxu0 0.0
    %204 = vmatpush1.msra.mxu0 0.0
    %205 = vmatprep.subr.mxu0 0.0
    %206 = vmatpush1.msra.mxu0 0.0
    %207 = vmatprep.subr.mxu0 0.0
    %208 = vmatpush1.msra.mxu0 0.0
    %209 = vmatprep.subr.mxu0 0.0
    %210 = vmatpush1.msra.mxu0 0.0
    %211 = vmatprep.subr.mxu0 0.0
    %212 = vmatpush1.msra.mxu0 %v172
    %213 = vmatprep.subr.mxu0 0.0
    %214 = vmatpush1.msra.mxu0 %v171
    %215 = vmatprep.subr.mxu0 0.0
    %216 = vmatpush2.msra.mxu0 0.0
    %217 = vmatprep.subr.mxu0 0.0
    %218 = vmatpush2.msra.mxu0 0.0
    %219 = vmatprep.subr.mxu0 0.0
    %220 = vmatpush2.msra.mxu0 0.0
    %221 = vmatprep.subr.mxu0 0.0
    %222 = vmatpush2.msra.mxu0 0.0
    %223 = vmatprep.subr.mxu0 0.0
    %224 = vmatpush2.msra.mxu0 0.0
    %225 = vmatprep.subr.mxu0 0.0
    %226 = vmatpush2.msra.mxu0 0.0
    %227 = vmatprep.subr.mxu0 0.0
    %228 = vmatpush2.msra.mxu0 0.0
    %229 = vmatprep.subr.mxu0 0.0
    %230 = vmatpush2.msra.mxu0 0.0
    %231 = vmatprep.subr.mxu0 0.0
    %232 = vmatpush2.msra.mxu0 0.0
    %233 = vmatprep.subr.mxu0 0.0
    %234 = vmatpush2.msra.mxu0 0.0
    %235 = vmatprep.subr.mxu0 0.0
    %236 = vmatpush2.msra.mxu0 0.0
    %237 = vmatprep.subr.mxu0 0.0
    %238 = vmatpush2.msra.mxu0 0.0
    %239 = vmatprep.subr.mxu0 0.0
    %240 = vmatpush2.msra.mxu0 0.0
    %241 = vmatprep.subr.mxu0 0.0
    %242 = vmatpush2.msra.mxu0 0.0
    %243 = vmatprep.subr.mxu0 0.0
    %244 = vmatpush2.msra.mxu0 0.0
    %245 = vmatprep.subr.mxu0 0.0
    %246 = vmatpush2.msra.mxu0 0.0
    %247 = vmatprep.mubr.f32.mxu0 0.0
    %248 = vmatmul.mubr.f32.gmra.mxu0 %v181
    %v249 = vpop.f32.mrf.mxu0
    %v250 = vadd.f32 %v178, %v249
    %v251 = vpop.f32.mrf.mxu0
    %252 = vdwg.mxu0
    %v253 = vld [vmem:[%s5] sm:$0x1]
    %v254 = vlaneseq
    %v255 = vshrl.u32 %v254, 7
    %v256 = vsub.s32 0, %v255
    %v257 = vrot.slane %v253, %v256
    %v258 = vadd.f32 %v250, %v257
    %v259 = vld [vmem:[%s6] sm:$0x1]
    %v260 = vld [vmem:[%s7] sm:$0x1]
    %vm261 = vcmask 261120
    %v262 = vsel %vm261, %v258, 0.0
    %263 = vadd.xlane.f32.xlu0 %v262
    %v264 = vpop.xlane.xlu0 %263
    %v265 = vrcp.pop 32.0
    %v266 = vmul.f32 %v264, %v265
    %v267 = vsub.f32 %v258, %v266
    %v268 = vmul.f32 %v267, %v267
    %v269 = vsel %vm261, %v268, 0.0
    %270 = vadd.xlane.f32.xlu0 %v269
    %v271 = vpop.xlane.xlu0 %270
    %v272 = vmul.f32 %v271, %v265
    %v273 = vadd.f32 %v272, 1e-05
    %v274 = vrsqrt.pop %v273
    %v275 = vmul.f32 %v267, %v274
    %v276 = vlaneseq
    %v277 = vshrl.u32 %v276, 7
    %v278 = vsub.s32 0, %v277
    %v279 = vrot.slane %v259, %v278
    %v280 = vmul.f32 %v275, %v279
    %v281 = vlaneseq
    %v282 = vshrl.u32 %v281, 7
    %v283 = vsub.s32 0, %v282
    %v284 = vrot.slane %v260, %v283
    %v285 = vadd.f32 %v280, %v284
    %v286 = vmax.f32 %v285, 0.0
    %v287 = vld [vmem:[%s1 + $0x1] sm:$0x1]
    %288 = vset.pattern.permute.xlu0 1
    %289 = vperm.xlu0 %288, %v48
    %v290 = vpop.permute.xlu0 %289
    %v292 = vlaneseq
    %v293 = vshrl.u32 %v292, 7
    %v294 = vsub.s32 0, %v293
    %v295 = vrot.slane %v287, %v294
    %v296 = vmul.f32 %v290, %v295
    %v297 = vadd.f32 %v296, %v65
    %v298 = vand.u32 2147483647, %v297
    %vm299 = vcmp.le.f32.partialorder %v298, 0.7853982
    %vm300 = vcmp.lt.s32.totalorder %v297, 0
    %v301 = vand.u32 %v297, 2139095040
    %v302 = vshrl.u32 %v301, 23
    %v303 = vsub.s32 %v302, 127
    %v304 = vand.u32 2147483647, %v297
    %v305 = vand.u32 %v304, 8388607
    %v306 = vor.u32 %v305, 8388608
    %v307 = vsub.s32 0, %v306
    %v308 = vadd.s32 %v303, 1
    %vm309 = vcmp.gt.s32.totalorder %v308, 0
    %v310 = vsel %vm309, %v308, 0
    %v311 = vshrl.u32 %v310, 5
    %v312 = vand.u32 %v310, 31
    %v313 = vsub.s32 32, %v312
    %v314 = vshrl.u32 683565275, %v313
    %v315 = vshll.u32 683565275, %v312
    %v316 = vshrl.u32 2475754826, %v313
    %v317 = vor.u32 %v315, %v316
    %v318 = vshll.u32 2475754826, %v312
    %v319 = vshrl.u32 2131351028, %v313
    %v320 = vor.u32 %v318, %v319
    %v321 = vshll.u32 2131351028, %v312
    %v322 = vshrl.u32 2102212464, %v313
    %v323 = vor.u32 %v321, %v322
    %v324 = vshll.u32 2102212464, %v312
    %v325 = vshrl.u32 920167782, %v313
    %v326 = vor.u32 %v324, %v325
    %v327 = vshll.u32 920167782, %v312
    %v328 = vshrl.u32 1326507024, %v313
    %v329 = vor.u32 %v327, %v328
    %vm330 = vcmp.lt.s32.totalorder %v311, 1
    %vm331 = vcmp.lt.s32.totalorder %v311, 2
    %vm332 = vcmp.lt.s32.totalorder %v311, 3
    %vm333 = vcmp.lt.s32.totalorder %v311, 4
    %v334 = vsel %vm330, %v314, %v317
    %v335 = vsel %vm333, %v323, 2102212464
    %v336 = vsel %vm332, %v320, %v335
    %v337 = vsel %vm331, %v334, %v336
    %v338 = vsel %vm330, %v317, %v320
    %v339 = vsel %vm333, %v326, 920167782
    %v340 = vsel %vm332, %v323, %v339
    %v341 = vsel %vm331, %v338, %v340
    %v342 = vsel %vm330, %v320, %v323
    %v343 = vsel %vm333, %v329, 1326507024
    %v344 = vsel %vm332, %v326, %v343
    %v345 = vsel %vm331, %v342, %v344
    %v346 = vshll.u32 %v306, 8
    %v347 = vmul.u32.u64.compose %v346, %v345
    %v348 = vextract.low.u32 %v347
    %v349 = vextract.high.u32 %v347
    %v350 = vmul.u32.u64.compose %v346, %v341
    %v351 = vextract.low.u32 %v350
    %v352 = vextract.high.u32 %v350
    %v353 = vmul.u32 %v346, %v337
    %v354 = vadd.s32 %v349, %v351
    %vm355 = vc.u32 %v349, %v351
    %v356 = vadd.s32 %v352, 1
    %v357 = vsel %vm355, %v356, %v352
    %v358 = vadd.s32 %v353, %v357
    %v359 = vadd.s32 %v358, 536870912
    %v360 = vshrl.u32 %v359, 30
    %v361 = vshll.u32 %v360, 30
    %v362 = vsub.s32 %v358, %v361
    %vm363 = vcmp.lt.s32.totalorder %v362, 0
    %v364 = vsub.s32 0, %v362
    %v365 = vsel %vm363, %v364, %v362
    %v366 = vclz %v365
    %v367 = vsub.s32 %v366, 2
    %vm368 = vcmp.gt.s32.totalorder 0, %v367
    %v369 = vsel %vm368, 0, %v367
    %v370 = vsub.s32 32, %v369
    %v371 = vshll.u32 %v362, %v369
    %v372 = vshrl.u32 %v354, %v370
    %v373 = vor.u32 %v371, %v372
    %v374 = vsub.s32 4294967266, %v369
    %v375 = vadd.s32 %v374, 127
    %v376 = vshll.u32 %v375, 23
    %v377 = vor.u32 4788187, %v376
    %v378 = vand.u32 2147483647, %v377
    %v380 = vcvt.s32.f32 %v373
    %v381 = vmul.f32 %v380, %v378
    %v382 = vxor.u32 %v381, 2147483648
    %v383 = vsel %vm300, %v382, %v381
    %v384 = vsub.s32 4, %v360
    %v385 = vsel %vm300, %v384, %v360
    %v386 = vsel %vm299, %v297, %v383
    %v387 = vsel %vm299, 0, %v385
    %v388 = vcosq.f32.pop %v386
    %v389 = vsinq.f32.pop %v386
    %vm390 = vweird.f32 %v297
    %v391 = vand.u32 %v387, 3
    %vm392 = vcmp.lt.s32.totalorder %v391, 2
    %vm393 = vcmp.eq.s32.totalorder %v391, 0
    %v394 = vxor.u32 %v389, 2147483648
    %v395 = vsel %vm393, %v388, %v394
    %vm396 = vcmp.eq.s32.totalorder %v391, 2
    %v397 = vxor.u32 %v388, 2147483648
    %v398 = vsel %vm396, %v397, %v389
    %v399 = vsel %vm392, %v395, %v398
    %v400 = vsel %vm390, nan, %v399
    %s401 = scalar_lea.vmem %s3, 16
    %v402 = vld [vmem:[%s401] sm:$0xff]
    %v403 = vld [vmem:[%s401 + $0x8] sm:$0xff]
    %v404 = vld [vmem:[%s4 + $0x1] sm:$0x1]
    %v405 = vlaneseq
    %v406 = vshrl.u32 %v405, 7
    %v407 = vsub.s32 0, %v406
    %v408 = vrot.slane %v404, %v407
    %v409 = vmul.f32 %v290, %v408
    %v411 = vsel %vm179, %v400, 0
    %413 = vmatprep.subr.mxu0 0.0
    %414 = vmatpush1.msra.mxu0 0.0
    %415 = vmatprep.subr.mxu0 0.0
    %416 = vmatpush1.msra.mxu0 0.0
    %417 = vmatprep.subr.mxu0 0.0
    %418 = vmatpush1.msra.mxu0 0.0
    %419 = vmatprep.subr.mxu0 0.0
    %420 = vmatpush1.msra.mxu0 0.0
    %421 = vmatprep.subr.mxu0 0.0
    %422 = vmatpush1.msra.mxu0 0.0
    %423 = vmatprep.subr.mxu0 0.0
    %424 = vmatpush1.msra.mxu0 0.0
    %425 = vmatprep.subr.mxu0 0.0
    %426 = vmatpush1.msra.mxu0 0.0
    %427 = vmatprep.subr.mxu0 0.0
    %428 = vmatpush1.msra.mxu0 0.0
    %429 = vmatprep.subr.mxu0 0.0
    %430 = vmatpush1.msra.mxu0 0.0
    %431 = vmatprep.subr.mxu0 0.0
    %432 = vmatpush1.msra.mxu0 0.0
    %433 = vmatprep.subr.mxu0 0.0
    %434 = vmatpush1.msra.mxu0 0.0
    %435 = vmatprep.subr.mxu0 0.0
    %436 = vmatpush1.msra.mxu0 0.0
    %437 = vmatprep.subr.mxu0 0.0
    %438 = vmatpush1.msra.mxu0 0.0
    %439 = vmatprep.subr.mxu0 0.0
    %440 = vmatpush1.msra.mxu0 0.0
    %441 = vmatprep.subr.mxu0 0.0
    %442 = vmatpush1.msra.mxu0 %v403
    %443 = vmatprep.subr.mxu0 0.0
    %444 = vmatpush1.msra.mxu0 %v402
    %445 = vmatprep.subr.mxu0 0.0
    %446 = vmatpush2.msra.mxu0 0.0
    %447 = vmatprep.subr.mxu0 0.0
    %448 = vmatpush2.msra.mxu0 0.0
    %449 = vmatprep.subr.mxu0 0.0
    %450 = vmatpush2.msra.mxu0 0.0
    %451 = vmatprep.subr.mxu0 0.0
    %452 = vmatpush2.msra.mxu0 0.0
    %453 = vmatprep.subr.mxu0 0.0
    %454 = vmatpush2.msra.mxu0 0.0
    %455 = vmatprep.subr.mxu0 0.0
    %456 = vmatpush2.msra.mxu0 0.0
    %457 = vmatprep.subr.mxu0 0.0
    %458 = vmatpush2.msra.mxu0 0.0
    %459 = vmatprep.subr.mxu0 0.0
    %460 = vmatpush2.msra.mxu0 0.0
    %461 = vmatprep.subr.mxu0 0.0
    %462 = vmatpush2.msra.mxu0 0.0
    %463 = vmatprep.subr.mxu0 0.0
    %464 = vmatpush2.msra.mxu0 0.0
    %465 = vmatprep.subr.mxu0 0.0
    %466 = vmatpush2.msra.mxu0 0.0
    %467 = vmatprep.subr.mxu0 0.0
    %468 = vmatpush2.msra.mxu0 0.0
    %469 = vmatprep.subr.mxu0 0.0
    %470 = vmatpush2.msra.mxu0 0.0
    %471 = vmatprep.subr.mxu0 0.0
    %472 = vmatpush2.msra.mxu0 0.0
    %473 = vmatprep.subr.mxu0 0.0
    %474 = vmatpush2.msra.mxu0 0.0
    %475 = vmatprep.subr.mxu0 0.0
    %476 = vmatpush2.msra.mxu0 0.0
    %477 = vmatprep.mubr.f32.mxu0 0.0
    %478 = vmatmul.mubr.f32.gmra.mxu0 %v411
    %v479 = vpop.f32.mrf.mxu0
    %v480 = vadd.f32 %v409, %v479
    %v481 = vpop.f32.mrf.mxu0
    %482 = vdwg.mxu0
    %v483 = vld [vmem:[%s5 + $0x1] sm:$0x1]
    %v484 = vlaneseq
    %v485 = vshrl.u32 %v484, 7
    %v486 = vsub.s32 0, %v485
    %v487 = vrot.slane %v483, %v486
    %v488 = vadd.f32 %v480, %v487
    %v489 = vld [vmem:[%s6 + $0x1] sm:$0x1]
    %v490 = vld [vmem:[%s7 + $0x1] sm:$0x1]
    %v491 = vsel %vm261, %v488, 0.0
    %492 = vadd.xlane.f32.xlu0 %v491
    %v493 = vpop.xlane.xlu0 %492
    %v494 = vmul.f32 %v493, %v265
    %v495 = vsub.f32 %v488, %v494
    %v496 = vmul.f32 %v495, %v495
    %v497 = vsel %vm261, %v496, 0.0
    %498 = vadd.xlane.f32.xlu0 %v497
    %v499 = vpop.xlane.xlu0 %498
    %v500 = vmul.f32 %v499, %v265
    %v501 = vadd.f32 %v500, 1e-05
    %v502 = vrsqrt.pop %v501
    %v503 = vmul.f32 %v495, %v502
    %v504 = vlaneseq
    %v505 = vshrl.u32 %v504, 7
    %v506 = vsub.s32 0, %v505
    %v507 = vrot.slane %v489, %v506
    %v508 = vmul.f32 %v503, %v507
    %v509 = vlaneseq
    %v510 = vshrl.u32 %v509, 7
    %v511 = vsub.s32 0, %v510
    %v512 = vrot.slane %v490, %v511
    %v513 = vadd.f32 %v508, %v512
    %v514 = vmax.f32 %v513, 0.0
    %v515 = vld [vmem:[%s1 + $0x2] sm:$0x1]
    %516 = vset.pattern.permute.xlu0 2
    %517 = vperm.xlu0 %516, %v48
    %v518 = vpop.permute.xlu0 %517
    %v520 = vlaneseq
    %v521 = vshrl.u32 %v520, 7
    %v522 = vsub.s32 0, %v521
    %v523 = vrot.slane %v515, %v522
    %v524 = vmul.f32 %v518, %v523
    %v525 = vadd.f32 %v524, %v65
    %v526 = vand.u32 2147483647, %v525
    %vm527 = vcmp.le.f32.partialorder %v526, 0.7853982
    %vm528 = vcmp.lt.s32.totalorder %v525, 0
    %v529 = vand.u32 %v525, 2139095040
    %v530 = vshrl.u32 %v529, 23
    %v531 = vsub.s32 %v530, 127
    %v532 = vand.u32 2147483647, %v525
    %v533 = vand.u32 %v532, 8388607
    %v534 = vor.u32 %v533, 8388608
    %v535 = vsub.s32 0, %v534
    %v536 = vadd.s32 %v531, 1
    %vm537 = vcmp.gt.s32.totalorder %v536, 0
    %v538 = vsel %vm537, %v536, 0
    %v539 = vshrl.u32 %v538, 5
    %v540 = vand.u32 %v538, 31
    %v541 = vsub.s32 32, %v540
    %v542 = vshrl.u32 683565275, %v541
    %v543 = vshll.u32 683565275, %v540
    %v544 = vshrl.u32 2475754826, %v541
    %v545 = vor.u32 %v543, %v544
    %v546 = vshll.u32 2475754826, %v540
    %v547 = vshrl.u32 2131351028, %v541
    %v548 = vor.u32 %v546, %v547
    %v549 = vshll.u32 2131351028, %v540
    %v550 = vshrl.u32 2102212464, %v541
    %v551 = vor.u32 %v549, %v550
    %v552 = vshll.u32 2102212464, %v540
    %v553 = vshrl.u32 920167782, %v541
    %v554 = vor.u32 %v552, %v553
    %v555 = vshll.u32 920167782, %v540
    %v556 = vshrl.u32 1326507024, %v541
    %v557 = vor.u32 %v555, %v556
    %vm558 = vcmp.lt.s32.totalorder %v539, 1
    %vm559 = vcmp.lt.s32.totalorder %v539, 2
    %vm560 = vcmp.lt.s32.totalorder %v539, 3
    %vm561 = vcmp.lt.s32.totalorder %v539, 4
    %v562 = vsel %vm558, %v542, %v545
    %v563 = vsel %vm561, %v551, 2102212464
    %v564 = vsel %vm560, %v548, %v563
    %v565 = vsel %vm559, %v562, %v564
    %v566 = vsel %vm558, %v545, %v548
    %v567 = vsel %vm561, %v554, 920167782
    %v568 = vsel %vm560, %v551, %v567
    %v569 = vsel %vm559, %v566, %v568
    %v570 = vsel %vm558, %v548, %v551
    %v571 = vsel %vm561, %v557, 1326507024
    %v572 = vsel %vm560, %v554, %v571
    %v573 = vsel %vm559, %v570, %v572
    %v574 = vshll.u32 %v534, 8
    %v575 = vmul.u32.u64.compose %v574, %v573
    %v576 = vextract.low.u32 %v575
    %v577 = vextract.high.u32 %v575
    %v578 = vmul.u32.u64.compose %v574, %v569
    %v579 = vextract.low.u32 %v578
    %v580 = vextract.high.u32 %v578
    %v581 = vmul.u32 %v574, %v565
    %v582 = vadd.s32 %v577, %v579
    %vm583 = vc.u32 %v577, %v579
    %v584 = vadd.s32 %v580, 1
    %v585 = vsel %vm583, %v584, %v580
    %v586 = vadd.s32 %v581, %v585
    %v587 = vadd.s32 %v586, 536870912
    %v588 = vshrl.u32 %v587, 30
    %v589 = vshll.u32 %v588, 30
    %v590 = vsub.s32 %v586, %v589
    %vm591 = vcmp.lt.s32.totalorder %v590, 0
    %v592 = vsub.s32 0, %v590
    %v593 = vsel %vm591, %v592, %v590
    %v594 = vclz %v593
    %v595 = vsub.s32 %v594, 2
    %vm596 = vcmp.gt.s32.totalorder 0, %v595
    %v597 = vsel %vm596, 0, %v595
    %v598 = vsub.s32 32, %v597
    %v599 = vshll.u32 %v590, %v597
    %v600 = vshrl.u32 %v582, %v598
    %v601 = vor.u32 %v599, %v600
    %v602 = vsub.s32 4294967266, %v597
    %v603 = vadd.s32 %v602, 127
    %v604 = vshll.u32 %v603, 23
    %v605 = vor.u32 4788187, %v604
    %v606 = vand.u32 2147483647, %v605
    %v608 = vcvt.s32.f32 %v601
    %v609 = vmul.f32 %v608, %v606
    %v610 = vxor.u32 %v609, 2147483648
    %v611 = vsel %vm528, %v610, %v609
    %v612 = vsub.s32 4, %v588
    %v613 = vsel %vm528, %v612, %v588
    %v614 = vsel %vm527, %v525, %v611
    %v615 = vsel %vm527, 0, %v613
    %v616 = vcosq.f32.pop %v614
    %v617 = vsinq.f32.pop %v614
    %vm618 = vweird.f32 %v525
    %v619 = vand.u32 %v615, 3
    %vm620 = vcmp.lt.s32.totalorder %v619, 2
    %vm621 = vcmp.eq.s32.totalorder %v619, 0
    %v622 = vxor.u32 %v617, 2147483648
    %v623 = vsel %vm621, %v616, %v622
    %vm624 = vcmp.eq.s32.totalorder %v619, 2
    %v625 = vxor.u32 %v616, 2147483648
    %v626 = vsel %vm624, %v625, %v617
    %v627 = vsel %vm620, %v623, %v626
    %v628 = vsel %vm618, nan, %v627
    %s629 = scalar_lea.vmem %s3, 32
    %v630 = vld [vmem:[%s629] sm:$0xff]
    %v631 = vld [vmem:[%s629 + $0x8] sm:$0xff]
    %v632 = vld [vmem:[%s4 + $0x2] sm:$0x1]
    %v633 = vlaneseq
    %v634 = vshrl.u32 %v633, 7
    %v635 = vsub.s32 0, %v634
    %v636 = vrot.slane %v632, %v635
    %v637 = vmul.f32 %v518, %v636
    %v639 = vsel %vm179, %v628, 0
    %641 = vmatprep.subr.mxu0 0.0
    %642 = vmatpush1.msra.mxu0 0.0
    %643 = vmatprep.subr.mxu0 0.0
    %644 = vmatpush1.msra.mxu0 0.0
    %645 = vmatprep.subr.mxu0 0.0
    %646 = vmatpush1.msra.mxu0 0.0
    %647 = vmatprep.subr.mxu0 0.0
    %648 = vmatpush1.msra.mxu0 0.0
    %649 = vmatprep.subr.mxu0 0.0
    %650 = vmatpush1.msra.mxu0 0.0
    %651 = vmatprep.subr.mxu0 0.0
    %652 = vmatpush1.msra.mxu0 0.0
    %653 = vmatprep.subr.mxu0 0.0
    %654 = vmatpush1.msra.mxu0 0.0
    %655 = vmatprep.subr.mxu0 0.0
    %656 = vmatpush1.msra.mxu0 0.0
    %657 = vmatprep.subr.mxu0 0.0
    %658 = vmatpush1.msra.mxu0 0.0
    %659 = vmatprep.subr.mxu0 0.0
    %660 = vmatpush1.msra.mxu0 0.0
    %661 = vmatprep.subr.mxu0 0.0
    %662 = vmatpush1.msra.mxu0 0.0
    %663 = vmatprep.subr.mxu0 0.0
    %664 = vmatpush1.msra.mxu0 0.0
    %665 = vmatprep.subr.mxu0 0.0
    %666 = vmatpush1.msra.mxu0 0.0
    %667 = vmatprep.subr.mxu0 0.0
    %668 = vmatpush1.msra.mxu0 0.0
    %669 = vmatprep.subr.mxu0 0.0
    %670 = vmatpush1.msra.mxu0 %v631
    %671 = vmatprep.subr.mxu0 0.0
    %672 = vmatpush1.msra.mxu0 %v630
    %673 = vmatprep.subr.mxu0 0.0
    %674 = vmatpush2.msra.mxu0 0.0
    %675 = vmatprep.subr.mxu0 0.0
    %676 = vmatpush2.msra.mxu0 0.0
    %677 = vmatprep.subr.mxu0 0.0
    %678 = vmatpush2.msra.mxu0 0.0
    %679 = vmatprep.subr.mxu0 0.0
    %680 = vmatpush2.msra.mxu0 0.0
    %681 = vmatprep.subr.mxu0 0.0
    %682 = vmatpush2.msra.mxu0 0.0
    %683 = vmatprep.subr.mxu0 0.0
    %684 = vmatpush2.msra.mxu0 0.0
    %685 = vmatprep.subr.mxu0 0.0
    %686 = vmatpush2.msra.mxu0 0.0
    %687 = vmatprep.subr.mxu0 0.0
    %688 = vmatpush2.msra.mxu0 0.0
    %689 = vmatprep.subr.mxu0 0.0
    %690 = vmatpush2.msra.mxu0 0.0
    %691 = vmatprep.subr.mxu0 0.0
    %692 = vmatpush2.msra.mxu0 0.0
    %693 = vmatprep.subr.mxu0 0.0
    %694 = vmatpush2.msra.mxu0 0.0
    %695 = vmatprep.subr.mxu0 0.0
    %696 = vmatpush2.msra.mxu0 0.0
    %697 = vmatprep.subr.mxu0 0.0
    %698 = vmatpush2.msra.mxu0 0.0
    %699 = vmatprep.subr.mxu0 0.0
    %700 = vmatpush2.msra.mxu0 0.0
    %701 = vmatprep.subr.mxu0 0.0
    %702 = vmatpush2.msra.mxu0 0.0
    %703 = vmatprep.subr.mxu0 0.0
    %704 = vmatpush2.msra.mxu0 0.0
    %705 = vmatprep.mubr.f32.mxu0 0.0
    %706 = vmatmul.mubr.f32.gmra.mxu0 %v639
    %v707 = vpop.f32.mrf.mxu0
    %v708 = vadd.f32 %v637, %v707
    %v709 = vpop.f32.mrf.mxu0
    %710 = vdwg.mxu0
    %v711 = vld [vmem:[%s5 + $0x2] sm:$0x1]
    %v712 = vlaneseq
    %v713 = vshrl.u32 %v712, 7
    %v714 = vsub.s32 0, %v713
    %v715 = vrot.slane %v711, %v714
    %v716 = vadd.f32 %v708, %v715
    %v717 = vld [vmem:[%s6 + $0x2] sm:$0x1]
    %v718 = vld [vmem:[%s7 + $0x2] sm:$0x1]
    %v719 = vsel %vm261, %v716, 0.0
    %720 = vadd.xlane.f32.xlu0 %v719
    %v721 = vpop.xlane.xlu0 %720
    %v722 = vmul.f32 %v721, %v265
    %v723 = vsub.f32 %v716, %v722
    %v724 = vmul.f32 %v723, %v723
    %v725 = vsel %vm261, %v724, 0.0
    %726 = vadd.xlane.f32.xlu0 %v725
    %v727 = vpop.xlane.xlu0 %726
    %v728 = vmul.f32 %v727, %v265
    %v729 = vadd.f32 %v728, 1e-05
    %v730 = vrsqrt.pop %v729
    %v731 = vmul.f32 %v723, %v730
    %v732 = vlaneseq
    %v733 = vshrl.u32 %v732, 7
    %v734 = vsub.s32 0, %v733
    %v735 = vrot.slane %v717, %v734
    %v736 = vmul.f32 %v731, %v735
    %v737 = vlaneseq
    %v738 = vshrl.u32 %v737, 7
    %v739 = vsub.s32 0, %v738
    %v740 = vrot.slane %v718, %v739
    %v741 = vadd.f32 %v736, %v740
    %v742 = vmax.f32 %v741, 0.0
    %v743 = vld [vmem:[%s1 + $0x3] sm:$0x1]
    %744 = vset.pattern.permute.xlu0 3
    %745 = vperm.xlu0 %744, %v48
    %v746 = vpop.permute.xlu0 %745
    %v748 = vlaneseq
    %v749 = vshrl.u32 %v748, 7
    %v750 = vsub.s32 0, %v749
    %v751 = vrot.slane %v743, %v750
    %v752 = vmul.f32 %v746, %v751
    %v753 = vadd.f32 %v752, %v65
    %v754 = vand.u32 2147483647, %v753
    %vm755 = vcmp.le.f32.partialorder %v754, 0.7853982
    %vm756 = vcmp.lt.s32.totalorder %v753, 0
    %v757 = vand.u32 %v753, 2139095040
    %v758 = vshrl.u32 %v757, 23
    %v759 = vsub.s32 %v758, 127
    %v760 = vand.u32 2147483647, %v753
    %v761 = vand.u32 %v760, 8388607
    %v762 = vor.u32 %v761, 8388608
    %v763 = vsub.s32 0, %v762
    %v764 = vadd.s32 %v759, 1
    %vm765 = vcmp.gt.s32.totalorder %v764, 0
    %v766 = vsel %vm765, %v764, 0
    %v767 = vshrl.u32 %v766, 5
    %v768 = vand.u32 %v766, 31
    %v769 = vsub.s32 32, %v768
    %v770 = vshrl.u32 683565275, %v769
    %v771 = vshll.u32 683565275, %v768
    %v772 = vshrl.u32 2475754826, %v769
    %v773 = vor.u32 %v771, %v772
    %v774 = vshll.u32 2475754826, %v768
    %v775 = vshrl.u32 2131351028, %v769
    %v776 = vor.u32 %v774, %v775
    %v777 = vshll.u32 2131351028, %v768
    %v778 = vshrl.u32 2102212464, %v769
    %v779 = vor.u32 %v777, %v778
    %v780 = vshll.u32 2102212464, %v768
    %v781 = vshrl.u32 920167782, %v769
    %v782 = vor.u32 %v780, %v781
    %v783 = vshll.u32 920167782, %v768
    %v784 = vshrl.u32 1326507024, %v769
    %v785 = vor.u32 %v783, %v784
    %vm786 = vcmp.lt.s32.totalorder %v767, 1
    %vm787 = vcmp.lt.s32.totalorder %v767, 2
    %vm788 = vcmp.lt.s32.totalorder %v767, 3
    %vm789 = vcmp.lt.s32.totalorder %v767, 4
    %v790 = vsel %vm786, %v770, %v773
    %v791 = vsel %vm789, %v779, 2102212464
    %v792 = vsel %vm788, %v776, %v791
    %v793 = vsel %vm787, %v790, %v792
    %v794 = vsel %vm786, %v773, %v776
    %v795 = vsel %vm789, %v782, 920167782
    %v796 = vsel %vm788, %v779, %v795
    %v797 = vsel %vm787, %v794, %v796
    %v798 = vsel %vm786, %v776, %v779
    %v799 = vsel %vm789, %v785, 1326507024
    %v800 = vsel %vm788, %v782, %v799
    %v801 = vsel %vm787, %v798, %v800
    %v802 = vshll.u32 %v762, 8
    %v803 = vmul.u32.u64.compose %v802, %v801
    %v804 = vextract.low.u32 %v803
    %v805 = vextract.high.u32 %v803
    %v806 = vmul.u32.u64.compose %v802, %v797
    %v807 = vextract.low.u32 %v806
    %v808 = vextract.high.u32 %v806
    %v809 = vmul.u32 %v802, %v793
    %v810 = vadd.s32 %v805, %v807
    %vm811 = vc.u32 %v805, %v807
    %v812 = vadd.s32 %v808, 1
    %v813 = vsel %vm811, %v812, %v808
    %v814 = vadd.s32 %v809, %v813
    %v815 = vadd.s32 %v814, 536870912
    %v816 = vshrl.u32 %v815, 30
    %v817 = vshll.u32 %v816, 30
    %v818 = vsub.s32 %v814, %v817
    %vm819 = vcmp.lt.s32.totalorder %v818, 0
    %v820 = vsub.s32 0, %v818
    %v821 = vsel %vm819, %v820, %v818
    %v822 = vclz %v821
    %v823 = vsub.s32 %v822, 2
    %vm824 = vcmp.gt.s32.totalorder 0, %v823
    %v825 = vsel %vm824, 0, %v823
    %v826 = vsub.s32 32, %v825
    %v827 = vshll.u32 %v818, %v825
    %v828 = vshrl.u32 %v810, %v826
    %v829 = vor.u32 %v827, %v828
    %v830 = vsub.s32 4294967266, %v825
    %v831 = vadd.s32 %v830, 127
    %v832 = vshll.u32 %v831, 23
    %v833 = vor.u32 4788187, %v832
    %v834 = vand.u32 2147483647, %v833
    %v836 = vcvt.s32.f32 %v829
    %v837 = vmul.f32 %v836, %v834
    %v838 = vxor.u32 %v837, 2147483648
    %v839 = vsel %vm756, %v838, %v837
    %v840 = vsub.s32 4, %v816
    %v841 = vsel %vm756, %v840, %v816
    %v842 = vsel %vm755, %v753, %v839
    %v843 = vsel %vm755, 0, %v841
    %v844 = vcosq.f32.pop %v842
    %v845 = vsinq.f32.pop %v842
    %vm846 = vweird.f32 %v753
    %v847 = vand.u32 %v843, 3
    %vm848 = vcmp.lt.s32.totalorder %v847, 2
    %vm849 = vcmp.eq.s32.totalorder %v847, 0
    %v850 = vxor.u32 %v845, 2147483648
    %v851 = vsel %vm849, %v844, %v850
    %vm852 = vcmp.eq.s32.totalorder %v847, 2
    %v853 = vxor.u32 %v844, 2147483648
    %v854 = vsel %vm852, %v853, %v845
    %v855 = vsel %vm848, %v851, %v854
    %v856 = vsel %vm846, nan, %v855
    %s857 = scalar_lea.vmem %s3, 48
    %v858 = vld [vmem:[%s857] sm:$0xff]
    %v859 = vld [vmem:[%s857 + $0x8] sm:$0xff]
    %v860 = vld [vmem:[%s4 + $0x3] sm:$0x1]
    %v861 = vlaneseq
    %v862 = vshrl.u32 %v861, 7
    %v863 = vsub.s32 0, %v862
    %v864 = vrot.slane %v860, %v863
    %v865 = vmul.f32 %v746, %v864
    %v867 = vsel %vm179, %v856, 0
    %869 = vmatprep.subr.mxu0 0.0
    %870 = vmatpush1.msra.mxu0 0.0
    %871 = vmatprep.subr.mxu0 0.0
    %872 = vmatpush1.msra.mxu0 0.0
    %873 = vmatprep.subr.mxu0 0.0
    %874 = vmatpush1.msra.mxu0 0.0
    %875 = vmatprep.subr.mxu0 0.0
    %876 = vmatpush1.msra.mxu0 0.0
    %877 = vmatprep.subr.mxu0 0.0
    %878 = vmatpush1.msra.mxu0 0.0
    %879 = vmatprep.subr.mxu0 0.0
    %880 = vmatpush1.msra.mxu0 0.0
    %881 = vmatprep.subr.mxu0 0.0
    %882 = vmatpush1.msra.mxu0 0.0
    %883 = vmatprep.subr.mxu0 0.0
    %884 = vmatpush1.msra.mxu0 0.0
    %885 = vmatprep.subr.mxu0 0.0
    %886 = vmatpush1.msra.mxu0 0.0
    %887 = vmatprep.subr.mxu0 0.0
    %888 = vmatpush1.msra.mxu0 0.0
    %889 = vmatprep.subr.mxu0 0.0
    %890 = vmatpush1.msra.mxu0 0.0
    %891 = vmatprep.subr.mxu0 0.0
    %892 = vmatpush1.msra.mxu0 0.0
    %893 = vmatprep.subr.mxu0 0.0
    %894 = vmatpush1.msra.mxu0 0.0
    %895 = vmatprep.subr.mxu0 0.0
    %896 = vmatpush1.msra.mxu0 0.0
    %897 = vmatprep.subr.mxu0 0.0
    %898 = vmatpush1.msra.mxu0 %v859
    %899 = vmatprep.subr.mxu0 0.0
    %900 = vmatpush1.msra.mxu0 %v858
    %901 = vmatprep.subr.mxu0 0.0
    %902 = vmatpush2.msra.mxu0 0.0
    %903 = vmatprep.subr.mxu0 0.0
    %904 = vmatpush2.msra.mxu0 0.0
    %905 = vmatprep.subr.mxu0 0.0
    %906 = vmatpush2.msra.mxu0 0.0
    %907 = vmatprep.subr.mxu0 0.0
    %908 = vmatpush2.msra.mxu0 0.0
    %909 = vmatprep.subr.mxu0 0.0
    %910 = vmatpush2.msra.mxu0 0.0
    %911 = vmatprep.subr.mxu0 0.0
    %912 = vmatpush2.msra.mxu0 0.0
    %913 = vmatprep.subr.mxu0 0.0
    %914 = vmatpush2.msra.mxu0 0.0
    %915 = vmatprep.subr.mxu0 0.0
    %916 = vmatpush2.msra.mxu0 0.0
    %917 = vmatprep.subr.mxu0 0.0
    %918 = vmatpush2.msra.mxu0 0.0
    %919 = vmatprep.subr.mxu0 0.0
    %920 = vmatpush2.msra.mxu0 0.0
    %921 = vmatprep.subr.mxu0 0.0
    %922 = vmatpush2.msra.mxu0 0.0
    %923 = vmatprep.subr.mxu0 0.0
    %924 = vmatpush2.msra.mxu0 0.0
    %925 = vmatprep.subr.mxu0 0.0
    %926 = vmatpush2.msra.mxu0 0.0
    %927 = vmatprep.subr.mxu0 0.0
    %928 = vmatpush2.msra.mxu0 0.0
    %929 = vmatprep.subr.mxu0 0.0
    %930 = vmatpush2.msra.mxu0 0.0
    %931 = vmatprep.subr.mxu0 0.0
    %932 = vmatpush2.msra.mxu0 0.0
    %933 = vmatprep.mubr.f32.mxu0 0.0
    %934 = vmatmul.mubr.f32.gmra.mxu0 %v867
    %v935 = vpop.f32.mrf.mxu0
    %v936 = vadd.f32 %v865, %v935
    %v937 = vpop.f32.mrf.mxu0
    %938 = vdwg.mxu0
    %v939 = vld [vmem:[%s5 + $0x3] sm:$0x1]
    %v940 = vlaneseq
    %v941 = vshrl.u32 %v940, 7
    %v942 = vsub.s32 0, %v941
    %v943 = vrot.slane %v939, %v942
    %v944 = vadd.f32 %v936, %v943
    %v945 = vld [vmem:[%s6 + $0x3] sm:$0x1]
    %v946 = vld [vmem:[%s7 + $0x3] sm:$0x1]
    %v947 = vsel %vm261, %v944, 0.0
    %948 = vadd.xlane.f32.xlu0 %v947
    %v949 = vpop.xlane.xlu0 %948
    %v950 = vmul.f32 %v949, %v265
    %v951 = vsub.f32 %v944, %v950
    %v952 = vmul.f32 %v951, %v951
    %v953 = vsel %vm261, %v952, 0.0
    %954 = vadd.xlane.f32.xlu0 %v953
    %v955 = vpop.xlane.xlu0 %954
    %v956 = vmul.f32 %v955, %v265
    %v957 = vadd.f32 %v956, 1e-05
    %v958 = vrsqrt.pop %v957
    %v959 = vmul.f32 %v951, %v958
    %v960 = vlaneseq
    %v961 = vshrl.u32 %v960, 7
    %v962 = vsub.s32 0, %v961
    %v963 = vrot.slane %v945, %v962
    %v964 = vmul.f32 %v959, %v963
    %v965 = vlaneseq
    %v966 = vshrl.u32 %v965, 7
    %v967 = vsub.s32 0, %v966
    %v968 = vrot.slane %v946, %v967
    %v969 = vadd.f32 %v964, %v968
    %v970 = vmax.f32 %v969, 0.0
    %972 = vrot.lane.b32.xlu0 %v514, 32
    %v973 = vpop.permute.xlu0 %972
    %976 = vrot.lane.b32.xlu0 %v742, 64
    %v977 = vpop.permute.xlu0 %976
    %980 = vrot.lane.b32.xlu0 %v970, 96
    %v981 = vpop.permute.xlu0 %980
    %v983 = vsel %vm261, %v286, %v973
    %vm984 = vcmask 523264
    %v985 = vsel %vm984, %v983, %v977
    %vm986 = vcmask 785408
    %v987 = vsel %vm986, %v985, %v981
    %v988 = vld [vmem:[%s8] sm:$0xff]
    %v989 = vld [vmem:[%s8 + $0x8] sm:$0xff]
    %v990 = vld [vmem:[%s8 + $0x10] sm:$0xff]
    %v991 = vld [vmem:[%s8 + $0x18] sm:$0xff]
    %v992 = vld [vmem:[%s8 + $0x20] sm:$0xff]
    %v993 = vld [vmem:[%s8 + $0x28] sm:$0xff]
    %v994 = vld [vmem:[%s8 + $0x30] sm:$0xff]
    %v995 = vld [vmem:[%s8 + $0x38] sm:$0xff]
    %v996 = vld [vmem:[%s8 + $0x40] sm:$0xff]
    %v997 = vld [vmem:[%s8 + $0x48] sm:$0xff]
    %v998 = vld [vmem:[%s8 + $0x50] sm:$0xff]
    %v999 = vld [vmem:[%s8 + $0x58] sm:$0xff]
    %v1000 = vld [vmem:[%s8 + $0x60] sm:$0xff]
    %v1001 = vld [vmem:[%s8 + $0x68] sm:$0xff]
    %v1002 = vld [vmem:[%s8 + $0x70] sm:$0xff]
    %v1003 = vld [vmem:[%s8 + $0x78] sm:$0xff]
    %v1004 = vld [vmem:[%s9] sm:$0x1]
    %v1006 = vlaneseq
    %v1007 = vshrl.u32 %v1006, 7
    %v1008 = vsub.s32 0, %v1007
    %v1009 = vrot.slane %v1004, %v1008
    %1011 = vmatprep.subr.mxu0 0.0
    %1012 = vmatpush1.msra.mxu0 %v1003
    %1013 = vmatprep.subr.mxu0 0.0
    %1014 = vmatpush1.msra.mxu0 %v1002
    %1015 = vmatprep.subr.mxu0 0.0
    %1016 = vmatpush1.msra.mxu0 %v1001
    %1017 = vmatprep.subr.mxu0 0.0
    %1018 = vmatpush1.msra.mxu0 %v1000
    %1019 = vmatprep.subr.mxu0 0.0
    %1020 = vmatpush1.msra.mxu0 %v999
    %1021 = vmatprep.subr.mxu0 0.0
    %1022 = vmatpush1.msra.mxu0 %v998
    %1023 = vmatprep.subr.mxu0 0.0
    %1024 = vmatpush1.msra.mxu0 %v997
    %1025 = vmatprep.subr.mxu0 0.0
    %1026 = vmatpush1.msra.mxu0 %v996
    %1027 = vmatprep.subr.mxu0 0.0
    %1028 = vmatpush1.msra.mxu0 %v995
    %1029 = vmatprep.subr.mxu0 0.0
    %1030 = vmatpush1.msra.mxu0 %v994
    %1031 = vmatprep.subr.mxu0 0.0
    %1032 = vmatpush1.msra.mxu0 %v993
    %1033 = vmatprep.subr.mxu0 0.0
    %1034 = vmatpush1.msra.mxu0 %v992
    %1035 = vmatprep.subr.mxu0 0.0
    %1036 = vmatpush1.msra.mxu0 %v991
    %1037 = vmatprep.subr.mxu0 0.0
    %1038 = vmatpush1.msra.mxu0 %v990
    %1039 = vmatprep.subr.mxu0 0.0
    %1040 = vmatpush1.msra.mxu0 %v989
    %1041 = vmatprep.subr.mxu0 0.0
    %1042 = vmatpush1.msra.mxu0 %v988
    %1043 = vmatprep.subr.mxu0 0.0
    %1044 = vmatpush2.msra.mxu0 0.0
    %1045 = vmatprep.subr.mxu0 0.0
    %1046 = vmatpush2.msra.mxu0 0.0
    %1047 = vmatprep.subr.mxu0 0.0
    %1048 = vmatpush2.msra.mxu0 0.0
    %1049 = vmatprep.subr.mxu0 0.0
    %1050 = vmatpush2.msra.mxu0 0.0
    %1051 = vmatprep.subr.mxu0 0.0
    %1052 = vmatpush2.msra.mxu0 0.0
    %1053 = vmatprep.subr.mxu0 0.0
    %1054 = vmatpush2.msra.mxu0 0.0
    %1055 = vmatprep.subr.mxu0 0.0
    %1056 = vmatpush2.msra.mxu0 0.0
    %1057 = vmatprep.subr.mxu0 0.0
    %1058 = vmatpush2.msra.mxu0 0.0
    %1059 = vmatprep.subr.mxu0 0.0
    %1060 = vmatpush2.msra.mxu0 0.0
    %1061 = vmatprep.subr.mxu0 0.0
    %1062 = vmatpush2.msra.mxu0 0.0
    %1063 = vmatprep.subr.mxu0 0.0
    %1064 = vmatpush2.msra.mxu0 0.0
    %1065 = vmatprep.subr.mxu0 0.0
    %1066 = vmatpush2.msra.mxu0 0.0
    %1067 = vmatprep.subr.mxu0 0.0
    %1068 = vmatpush2.msra.mxu0 0.0
    %1069 = vmatprep.subr.mxu0 0.0
    %1070 = vmatpush2.msra.mxu0 0.0
    %1071 = vmatprep.subr.mxu0 0.0
    %1072 = vmatpush2.msra.mxu0 0.0
    %1073 = vmatprep.subr.mxu0 0.0
    %1074 = vmatpush2.msra.mxu0 0.0
    %1075 = vmatprep.mubr.f32.mxu0 0.0
    %1076 = vmatmul.mubr.f32.gmra.mxu0 %v987
    %v1077 = vpop.f32.mrf.mxu0
    %v1078 = vadd.f32 %v1009, %v1077
    %v1079 = vpop.f32.mrf.mxu0
    %1080 = vdwg.mxu0
    %v1081 = vld [vmem:[%s10] sm:$0x1]
    %v1082 = vld [vmem:[%s11] sm:$0x1]
    %v1083 = vsel %vm261, %v1078, 0.0
    %1084 = vadd.xlane.f32.xlu0 %v1083
    %v1085 = vpop.xlane.xlu0 %1084
    %v1086 = vmul.f32 %v1085, %v265
    %v1087 = vsub.f32 %v1078, %v1086
    %v1088 = vmul.f32 %v1087, %v1087
    %v1089 = vsel %vm261, %v1088, 0.0
    %1090 = vadd.xlane.f32.xlu0 %v1089
    %v1091 = vpop.xlane.xlu0 %1090
    %v1092 = vmul.f32 %v1091, %v265
    %v1093 = vadd.f32 %v1092, 1e-05
    %v1094 = vrsqrt.pop %v1093
    %v1095 = vmul.f32 %v1087, %v1094
    %v1097 = vlaneseq
    %v1098 = vshrl.u32 %v1097, 7
    %v1099 = vsub.s32 0, %v1098
    %v1100 = vrot.slane %v1081, %v1099
    %v1102 = vmul.f32 %v1095, %v1100
    %v1104 = vlaneseq
    %v1105 = vshrl.u32 %v1104, 7
    %v1106 = vsub.s32 0, %v1105
    %v1107 = vrot.slane %v1082, %v1106
    %v1109 = vadd.f32 %v1102, %v1107
    %v1110 = vmax.f32 %v1109, 0.0
    %v1111 = vld [vmem:[%s12] sm:$0xff]
    %v1112 = vld [vmem:[%s12 + $0x8] sm:$0xff]
    %v1113 = vld [vmem:[%s12 + $0x10] sm:$0xff]
    %v1114 = vld [vmem:[%s12 + $0x18] sm:$0xff]
    %v1115 = vld [vmem:[%s13] sm:$0x1]
    %v1117 = vlaneseq
    %v1118 = vshrl.u32 %v1117, 7
    %v1119 = vsub.s32 0, %v1118
    %v1120 = vrot.slane %v1115, %v1119
    %v1123 = vsel %vm261, %v1110, 0
    %1125 = vmatprep.subr.mxu0 0.0
    %1126 = vmatpush1.msra.mxu0 0.0
    %1127 = vmatprep.subr.mxu0 0.0
    %1128 = vmatpush1.msra.mxu0 0.0
    %1129 = vmatprep.subr.mxu0 0.0
    %1130 = vmatpush1.msra.mxu0 0.0
    %1131 = vmatprep.subr.mxu0 0.0
    %1132 = vmatpush1.msra.mxu0 0.0
    %1133 = vmatprep.subr.mxu0 0.0
    %1134 = vmatpush1.msra.mxu0 0.0
    %1135 = vmatprep.subr.mxu0 0.0
    %1136 = vmatpush1.msra.mxu0 0.0
    %1137 = vmatprep.subr.mxu0 0.0
    %1138 = vmatpush1.msra.mxu0 0.0
    %1139 = vmatprep.subr.mxu0 0.0
    %1140 = vmatpush1.msra.mxu0 0.0
    %1141 = vmatprep.subr.mxu0 0.0
    %1142 = vmatpush1.msra.mxu0 0.0
    %1143 = vmatprep.subr.mxu0 0.0
    %1144 = vmatpush1.msra.mxu0 0.0
    %1145 = vmatprep.subr.mxu0 0.0
    %1146 = vmatpush1.msra.mxu0 0.0
    %1147 = vmatprep.subr.mxu0 0.0
    %1148 = vmatpush1.msra.mxu0 0.0
    %1149 = vmatprep.subr.mxu0 0.0
    %1150 = vmatpush1.msra.mxu0 %v1114
    %1151 = vmatprep.subr.mxu0 0.0
    %1152 = vmatpush1.msra.mxu0 %v1113
    %1153 = vmatprep.subr.mxu0 0.0
    %1154 = vmatpush1.msra.mxu0 %v1112
    %1155 = vmatprep.subr.mxu0 0.0
    %1156 = vmatpush1.msra.mxu0 %v1111
    %1157 = vmatprep.subr.mxu0 0.0
    %1158 = vmatpush2.msra.mxu0 0.0
    %1159 = vmatprep.subr.mxu0 0.0
    %1160 = vmatpush2.msra.mxu0 0.0
    %1161 = vmatprep.subr.mxu0 0.0
    %1162 = vmatpush2.msra.mxu0 0.0
    %1163 = vmatprep.subr.mxu0 0.0
    %1164 = vmatpush2.msra.mxu0 0.0
    %1165 = vmatprep.subr.mxu0 0.0
    %1166 = vmatpush2.msra.mxu0 0.0
    %1167 = vmatprep.subr.mxu0 0.0
    %1168 = vmatpush2.msra.mxu0 0.0
    %1169 = vmatprep.subr.mxu0 0.0
    %1170 = vmatpush2.msra.mxu0 0.0
    %1171 = vmatprep.subr.mxu0 0.0
    %1172 = vmatpush2.msra.mxu0 0.0
    %1173 = vmatprep.subr.mxu0 0.0
    %1174 = vmatpush2.msra.mxu0 0.0
    %1175 = vmatprep.subr.mxu0 0.0
    %1176 = vmatpush2.msra.mxu0 0.0
    %1177 = vmatprep.subr.mxu0 0.0
    %1178 = vmatpush2.msra.mxu0 0.0
    %1179 = vmatprep.subr.mxu0 0.0
    %1180 = vmatpush2.msra.mxu0 0.0
    %1181 = vmatprep.subr.mxu0 0.0
    %1182 = vmatpush2.msra.mxu0 0.0
    %1183 = vmatprep.subr.mxu0 0.0
    %1184 = vmatpush2.msra.mxu0 0.0
    %1185 = vmatprep.subr.mxu0 0.0
    %1186 = vmatpush2.msra.mxu0 0.0
    %1187 = vmatprep.subr.mxu0 0.0
    %1188 = vmatpush2.msra.mxu0 0.0
    %1189 = vmatprep.mubr.f32.mxu0 0.0
    %1190 = vmatmul.mubr.f32.gmra.mxu0 %v1123
    %v1191 = vpop.f32.mrf.mxu0
    %v1192 = vadd.f32 %v1120, %v1191
    %v1193 = vpop.f32.mrf.mxu0
    %1194 = vdwg.mxu0
    %1195 = vst.msk [vmem:[#allocation2] sm:$0xff] %vm261, %v1192
    // Predicated region
    $region58: #{tpu_custom_call.1} parent=1 // pred_check
      _
    $region59: #{tpu_custom_call.1} parent=1 // pred_check_branch
      %1197 = sbr.rel (0) target = $region61
    $region60: #{tpu_custom_call.1} parent=1 // pred_region
      %s1199 = ssub.s32 128, 128
      %1200 = vsyncadd [#allocation3], %s1199
      %s1202 = sshll.u32 [#allocation2], 4
      %s1203 = int_to_ptr.vmem [resolvable:$true] %s1202
      %1205 = dma.vmem_to_hbm [thread:$0]  %s1203, 128, %s14, [#allocation3]
    $region61: #{tpu_custom_call.1} parent=1 // pred_fallthru
      _
    // Predicated region
    $region62: #{tpu_custom_call.1} parent=1 // pred_check
      _
    $region63: #{tpu_custom_call.1} parent=1 // pred_check_branch
      %1207 = sbr.rel (0) target = $region65
    $region64: #{tpu_custom_call.1} parent=1 // pred_region
      %1208 = dma.done [#allocation3], 128
    $region65: #{tpu_custom_call.1} parent=1 // pred_fallthru
      _
    %1209 = vsyncpa [#allocation3], 1

</llo_original>
